<compile_context>
chip_gen: v5e
topology: v5e:2x2
jax: 0.10.0
libtpu: 0.0.40
codegen_flags: <defaults>
</compile_context>

<pallas_src>
import jax
import jax.numpy as jnp
from jax.experimental import pallas as pl
from jax.experimental.pallas import tpu as pltpu

EPS = 1e-5
MXU_DTYPE = jnp.bfloat16               # MXU operand dtype (f32 accumulation)
ACT_DTYPE = jnp.bfloat16               # inter-pass activation storage dtype
VMEM_BUDGET_BYTES = 16 * 1024 * 1024   # per-step working-set budget for B
VMEM_LIMIT_BYTES = 32 * 1024 * 1024    # scoped VMEM limit handed to Mosaic
MAX_IMAGES_PER_STEP = 8

_TAPS = tuple((dy, dx) for dy in (-1, 0, 1) for dx in (-1, 0, 1))


def _round_up(x, m):
    return ((x + m - 1) // m) * m


def _choose_images_per_step(N, Cp, HWp):
    """Largest divisor B of N (<= MAX) whose working set fits the budget."""
    best = 1
    for b in range(1, min(N, MAX_IMAGES_PER_STEP) + 1):
        if N % b:
            continue
        # x in (f32, double buffered) + y out (bf16, double buffered)
        # + bf16 tap slab (9x) + f32 matmul result, per image.
        per_img = Cp * HWp * (4 * 2 + 2 * 2 + 9 * 2 + 4)
        fixed = 16 * HWp * 4 + 18 * Cp * Cp + (1 << 16)
        if b * per_img + fixed <= VMEM_BUDGET_BYTES:
            best = b
    # Prefer >= 2 grid steps so ("parallel",) can use both v7x TensorCores.
    if best > 1 and N // best < 2:
        for b in range(best - 1, 0, -1):
            if N % b == 0 and N // b >= 2:
                best = b
                break
    return best


def _partial_stats(y):
    # per-channel [sum, sum of squares] over this step's pixels -> (Cp, 2)
    return jnp.concatenate(
        [jnp.sum(y, axis=1, keepdims=True),
         jnp.sum(y * y, axis=1, keepdims=True)], axis=1)


def _boundary_masks(H, W, HWp):
    """(9, HWp) f32 masks: 1 where tap (dy,dx) reads a valid in-image pixel."""
    p = jnp.arange(HWp, dtype=jnp.int32)
    h = p // W
    w = p - h * W
    in_img = p < H * W                        # also zeroes lane-padding pixels
    rows = []
    for dy, dx in _TAPS:
        ok = (in_img & (h + dy >= 0) & (h + dy < H)
              & (w + dx >= 0) & (w + dx < W))
        rows.append(ok)
    return jnp.stack(rows).astype(jnp.float32)


def _make_kernels(W, HWp, Cp, B, has_pad):
    """Kernel bodies for the three passes (closures over static geometry)."""

    def emit_taps(img, b, mask_ref, slab_ref):
        # img: (Cp, HWp) f32 for image slot b of this step; writes its 9
        # shifted taps, boundary-masked and cast to bf16, into the slab.
        col = b * HWp
        for t, (dy, dx) in enumerate(_TAPS):
            k = dy * W + dx                    # combined row-major pixel shift
            tap = img if k == 0 else pltpu.roll(img, shift=(-k) % HWp, axis=1)
            if k != 0 or has_pad:              # center tap masked only for pads
                tap = tap * mask_ref[pl.ds(t, 1), :]
            slab_ref[pl.ds(t * Cp, Cp), pl.ds(col, HWp)] = tap.astype(MXU_DTYPE)

    def matmul(w_ref, slab_ref):
        # (Cp, 9*Cp) x (9*Cp, B*HWp) -> (Cp, B*HWp), f32 accumulation.
        return jnp.dot(w_ref[...], slab_ref[...],
                       preferred_element_type=jnp.float32)

    def conv1_kernel(x_ref, w_ref, mask_ref, y_ref, s_ref, slab_ref):
        for b in range(B):
            emit_taps(x_ref[b], b, mask_ref, slab_ref)
        y = matmul(w_ref, slab_ref)                        # conv1
        for b in range(B):
            y_ref[b] = y[:, b * HWp:(b + 1) * HWp].astype(ACT_DTYPE)
        s_ref[0] = _partial_stats(y)                       # bn1 partial stats

    def conv2_kernel(y1_ref, sc_ref, sh_ref, w_ref, mask_ref,
                     y_ref, s_ref, slab_ref):
        sc = sc_ref[...]
        sh = sh_ref[...]
        for b in range(B):
            # bn1 folded scale/shift + relu in f32, then conv2 taps
            z = jnp.maximum(y1_ref[b].astype(jnp.float32) * sc + sh, 0.0)
            emit_taps(z, b, mask_ref, slab_ref)
        y = matmul(w_ref, slab_ref)                        # conv2
        for b in range(B):
            y_ref[b] = y[:, b * HWp:(b + 1) * HWp].astype(ACT_DTYPE)
        s_ref[0] = _partial_stats(y)                       # bn2 partial stats

    def final_kernel(y2_ref, sc_ref, sh_ref, x_ref, o_ref):
        sc = sc_ref[...]
        sh = sh_ref[...]
        for b in range(B):
            # bn2 folded scale/shift + residual add + relu
            o_ref[b] = jnp.maximum(
                y2_ref[b].astype(jnp.float32) * sc + sh + x_ref[b], 0.0)

    return conv1_kernel, conv2_kernel, final_kernel


@jax.jit
def basic_block(x_nchw, params):
    """params = (w1 OIHW, gamma1, beta1, w2 OIHW, gamma2, beta2)."""
    w1, g1, b1, w2, g2, b2 = params
    N, C, H, W = x_nchw.shape
    HW = H * W
    Cp = _round_up(C, 16)        # sublane-aligned channels (16: bf16 packing)
    HWp = _round_up(HW, 128)     # lane-dense pixel axis
    has_pad = HWp != HW
    B = _choose_images_per_step(N, Cp, HWp)
    G = N // B

    # ---- wrapper-side layout plumbing (reshape + pad only, no transpose) ----
    x_slab = jnp.pad(x_nchw.reshape(N, C, HW).astype(jnp.float32),
                     ((0, 0), (0, Cp - C), (0, HWp - HW)))
    masks = _boundary_masks(H, W, HWp)

    def pack_weight(w):
        # OIHW -> (O, kh, kw, I) -> pad O,I -> (Cp, 9*Cp) bf16; column index
        # kh*3*Cp + kw*Cp + cin matches the slab row ordering tap*Cp + cin.
        w_t = jnp.transpose(w, (0, 2, 3, 1)).astype(jnp.float32)
        w_p = jnp.pad(w_t, ((0, Cp - C), (0, 0), (0, 0), (0, Cp - C)))
        return w_p.reshape(Cp, 9 * Cp).astype(MXU_DTYPE)

    def pad_vec(v):
        return jnp.pad(v.astype(jnp.float32), (0, Cp - C))

    w1_m, w2_m = pack_weight(w1), pack_weight(w2)
    g1_p, b1_p, g2_p, b2_p = pad_vec(g1), pad_vec(b1), pad_vec(g2), pad_vec(b2)

    conv1_kernel, conv2_kernel, final_kernel = _make_kernels(
        W, HWp, Cp, B, has_pad)

    act_spec = pl.BlockSpec((B, Cp, HWp), lambda n: (n, 0, 0))
    stat_spec = pl.BlockSpec((1, Cp, 2), lambda n: (n, 0, 0))
    # Constant-index operands: single-buffered (their block never changes).
    w_spec = pl.BlockSpec((Cp, 9 * Cp), lambda n: (0, 0),
                          pipeline_mode=pl.Buffered(1))
    mask_spec = pl.BlockSpec((9, HWp), lambda n: (0, 0),
                             pipeline_mode=pl.Buffered(1))
    vec_spec = pl.BlockSpec((Cp, 1), lambda n: (0, 0),
                            pipeline_mode=pl.Buffered(1))

    cparams = pltpu.CompilerParams(
        dimension_semantics=("parallel",),    # shard batch grid across TCs
        vmem_limit_bytes=VMEM_LIMIT_BYTES)

    act_f32 = jax.ShapeDtypeStruct((N, Cp, HWp), jnp.float32)
    act_bf16 = jax.ShapeDtypeStruct((N, Cp, HWp), ACT_DTYPE)
    stat_shape = jax.ShapeDtypeStruct((G, Cp, 2), jnp.float32)
    slab_scratch = pltpu.VMEM((9 * Cp, B * HWp), MXU_DTYPE)

    def fold_bn(psums, gamma, beta):
        # global batch statistics -> per-channel scale/shift (tiny, plain JAX)
        tot = jnp.sum(psums, axis=0)                  # (Cp, 2)
        count = float(N * HW)                         # pad pixels contribute 0
        mean = tot[:, 0] / count
        var = jnp.maximum(tot[:, 1] / count - mean * mean, 0.0)
        scale = gamma * jax.lax.rsqrt(var + EPS)
        shift = beta - mean * scale
        return scale.reshape(Cp, 1), shift.reshape(Cp, 1)

    # pass 1: conv1 + per-step BN1 partial stats
    y1, ps1 = pl.pallas_call(
        conv1_kernel,
        grid=(G,),
        in_specs=[act_spec, w_spec, mask_spec],
        out_specs=(act_spec, stat_spec),
        out_shape=(act_bf16, stat_shape),
        scratch_shapes=[slab_scratch],
        compiler_params=cparams,
    )(x_slab, w1_m, masks)
    sc1, sh1 = fold_bn(ps1, g1_p, b1_p)

    # pass 2: bn1 + relu + conv2 + per-step BN2 partial stats
    y2, ps2 = pl.pallas_call(
        conv2_kernel,
        grid=(G,),
        in_specs=[act_spec, vec_spec, vec_spec, w_spec, mask_spec],
        out_specs=(act_spec, stat_spec),
        out_shape=(act_bf16, stat_shape),
        scratch_shapes=[slab_scratch],
        compiler_params=cparams,
    )(y1, sc1, sh1, w2_m, masks)
    sc2, sh2 = fold_bn(ps2, g2_p, b2_p)

    # pass 3: bn2 + residual add + relu
    out = pl.pallas_call(
        final_kernel,
        grid=(G,),
        in_specs=[act_spec, vec_spec, vec_spec, act_spec],
        out_specs=act_spec,
        out_shape=act_f32,
        compiler_params=cparams,
    )(y2, sc2, sh2, x_slab)

    return out[:, :C, :HW].reshape(N, C, H, W).astype(x_nchw.dtype)


def basic_block_ref(x_nchw, params):
    """Pure-JAX reference (matches PyTorch training-mode forward)."""
    w1, g1, b1, w2, g2, b2 = params

    def conv(x, w):
        return jax.lax.conv_general_dilated(
            x, w, window_strides=(1, 1), padding=((1, 1), (1, 1)),
            dimension_numbers=("NCHW", "OIHW", "NCHW"))

    def bn(y, g, b):
        mean = jnp.mean(y, axis=(0, 2, 3), keepdims=True)
        var = jnp.mean((y - mean) ** 2, axis=(0, 2, 3), keepdims=True)
        return ((y - mean) * jax.lax.rsqrt(var + EPS)
                * g.reshape(1, -1, 1, 1) + b.reshape(1, -1, 1, 1))

    out = jnp.maximum(bn(conv(x_nchw, w1), g1, b1), 0.0)
    out = bn(conv(out, w2), g2, b2)
    return jnp.maximum(out + x_nchw, 0.0)


if __name__ == "__main__":
    key = jax.random.PRNGKey(0)
    ks = jax.random.split(key, 7)

    N, C, H, W = 2, 8, 16, 16   # inplanes == planes (identity residual)
    x = jax.random.normal(ks[0], (N, C, H, W), jnp.float32)

    # Deterministic synthetic parameters (shapes from BasicBlock.__init__)
    w1 = 0.1 * jax.random.normal(ks[1], (C, C, 3, 3), jnp.float32)   # conv1.weight
    w2 = 0.1 * jax.random.normal(ks[2], (C, C, 3, 3), jnp.float32)   # conv2.weight
    g1 = 1.0 + 0.1 * jax.random.normal(ks[3], (C,), jnp.float32)     # bn1.weight
    b1 = 0.1 * jax.random.normal(ks[4], (C,), jnp.float32)           # bn1.bias
    g2 = 1.0 + 0.1 * jax.random.normal(ks[5], (C,), jnp.float32)     # bn2.weight
    b2 = 0.1 * jax.random.normal(ks[6], (C,), jnp.float32)           # bn2.bias
    params = (w1, g1, b1, w2, g2, b2)

    out = jax.block_until_ready(basic_block(x, params))
    ref = basic_block_ref(x, params)
    err = float(jnp.max(jnp.abs(out - ref)))
    assert out.shape == (N, C, H, W)
    # bf16 MXU operands + bf16 inter-pass activations -> loosened tolerance.
    assert jnp.allclose(out, ref, atol=5e-2, rtol=5e-2), f"max abs err {err}"
    print("KERNEL_OK")
</pallas_src>

<mosaic_0001>
module attributes {stable_mosaic.version = 11 : i64} {
  func.func @conv1_kernel(%arg0: i32, %arg1: memref<1x16x256xf32, #tpu.memory_space<vmem>>, %arg2: memref<16x144xbf16, #tpu.memory_space<vmem>>, %arg3: memref<9x256xf32, #tpu.memory_space<vmem>>, %arg4: memref<1x16x256xbf16, #tpu.memory_space<vmem>>, %arg5: memref<1x16x2xf32, #tpu.memory_space<vmem>>, %arg6: memref<144x256xbf16, #tpu.memory_space<vmem>>) attributes {dimension_semantics = [#tpu.dimension_semantics<parallel>], iteration_bounds = array<i64: 2>, scalar_prefetch = 0 : i64, scratch_operands = 1 : i64, tpu.core_type = #tpu.core_type<tc>, window_params = [{transform_indices = @transform_0, window_bounds = array<i64: 1, 16, 256>}, {pipeline_mode = #tpu.pipeline_mode<synchronous>, transform_indices = @transform_1, window_bounds = array<i64: 16, 144>}, {pipeline_mode = #tpu.pipeline_mode<synchronous>, transform_indices = @transform_2, window_bounds = array<i64: 9, 256>}, {transform_indices = @transform_3, window_bounds = array<i64: 1, 16, 256>}, {transform_indices = @transform_4, window_bounds = array<i64: 1, 16, 2>}]} {
    %c0 = arith.constant 0 : index
    %c0_0 = arith.constant 0 : index
    %c0_1 = arith.constant 0 : index
    %0 = vector.load %arg1[%c0, %c0_0, %c0_1] : memref<1x16x256xf32, #tpu.memory_space<vmem>>, vector<1x16x256xf32>
    %1 = vector.shape_cast %0 : vector<1x16x256xf32> to vector<16x256xf32>
    %c17_i32 = arith.constant 17 : i32
    %2 = tpu.dynamic_rotate %1 by %c17_i32 dim 1 : vector<16x256xf32>, i32 -> vector<16x256xf32>
    %c0_2 = arith.constant 0 : index
    %c0_3 = arith.constant 0 : index
    %3 = vector.load %arg3[%c0_2, %c0_3] : memref<9x256xf32, #tpu.memory_space<vmem>>, vector<1x256xf32>
    %4 = vector.broadcast %3 : vector<1x256xf32> to vector<16x256xf32>
    %5 = arith.mulf %2, %4 : vector<16x256xf32>
    %6 = arith.truncf %5 : vector<16x256xf32> to vector<16x256xbf16>
    %c0_4 = arith.constant 0 : index
    %c0_5 = arith.constant 0 : index
    %7 = vector.load %arg6[%c0_4, %c0_5] : memref<144x256xbf16, #tpu.memory_space<vmem>>, vector<16x256xbf16>
    tpu.vector_store %arg6[%c0_4, %c0_5], %6 {strides = array<i32>} : memref<144x256xbf16, #tpu.memory_space<vmem>>, vector<16x256xbf16>,
    %c16_i32 = arith.constant 16 : i32
    %8 = tpu.dynamic_rotate %1 by %c16_i32 dim 1 : vector<16x256xf32>, i32 -> vector<16x256xf32>
    %c1 = arith.constant 1 : index
    %c0_6 = arith.constant 0 : index
    %9 = vector.load %arg3[%c1, %c0_6] : memref<9x256xf32, #tpu.memory_space<vmem>>, vector<1x256xf32>
    %10 = vector.broadcast %9 : vector<1x256xf32> to vector<16x256xf32>
    %11 = arith.mulf %8, %10 : vector<16x256xf32>
    %12 = arith.truncf %11 : vector<16x256xf32> to vector<16x256xbf16>
    %c16 = arith.constant 16 : index
    %c0_7 = arith.constant 0 : index
    %13 = vector.load %arg6[%c16, %c0_7] : memref<144x256xbf16, #tpu.memory_space<vmem>>, vector<16x256xbf16>
    tpu.vector_store %arg6[%c16, %c0_7], %12 {strides = array<i32>} : memref<144x256xbf16, #tpu.memory_space<vmem>>, vector<16x256xbf16>,
    %c15_i32 = arith.constant 15 : i32
    %14 = tpu.dynamic_rotate %1 by %c15_i32 dim 1 : vector<16x256xf32>, i32 -> vector<16x256xf32>
    %c2 = arith.constant 2 : index
    %c0_8 = arith.constant 0 : index
    %15 = vector.load %arg3[%c2, %c0_8] : memref<9x256xf32, #tpu.memory_space<vmem>>, vector<1x256xf32>
    %16 = vector.broadcast %15 : vector<1x256xf32> to vector<16x256xf32>
    %17 = arith.mulf %14, %16 : vector<16x256xf32>
    %18 = arith.truncf %17 : vector<16x256xf32> to vector<16x256xbf16>
    %c32 = arith.constant 32 : index
    %c0_9 = arith.constant 0 : index
    %19 = vector.load %arg6[%c32, %c0_9] : memref<144x256xbf16, #tpu.memory_space<vmem>>, vector<16x256xbf16>
    tpu.vector_store %arg6[%c32, %c0_9], %18 {strides = array<i32>} : memref<144x256xbf16, #tpu.memory_space<vmem>>, vector<16x256xbf16>,
    %c1_i32 = arith.constant 1 : i32
    %20 = tpu.dynamic_rotate %1 by %c1_i32 dim 1 : vector<16x256xf32>, i32 -> vector<16x256xf32>
    %c3 = arith.constant 3 : index
    %c0_10 = arith.constant 0 : index
    %21 = vector.load %arg3[%c3, %c0_10] : memref<9x256xf32, #tpu.memory_space<vmem>>, vector<1x256xf32>
    %22 = vector.broadcast %21 : vector<1x256xf32> to vector<16x256xf32>
    %23 = arith.mulf %20, %22 : vector<16x256xf32>
    %24 = arith.truncf %23 : vector<16x256xf32> to vector<16x256xbf16>
    %c48 = arith.constant 48 : index
    %c0_11 = arith.constant 0 : index
    %25 = vector.load %arg6[%c48, %c0_11] : memref<144x256xbf16, #tpu.memory_space<vmem>>, vector<16x256xbf16>
    tpu.vector_store %arg6[%c48, %c0_11], %24 {strides = array<i32>} : memref<144x256xbf16, #tpu.memory_space<vmem>>, vector<16x256xbf16>,
    %26 = arith.truncf %1 : vector<16x256xf32> to vector<16x256xbf16>
    %c64 = arith.constant 64 : index
    %c0_12 = arith.constant 0 : index
    %27 = vector.load %arg6[%c64, %c0_12] : memref<144x256xbf16, #tpu.memory_space<vmem>>, vector<16x256xbf16>
    tpu.vector_store %arg6[%c64, %c0_12], %26 {strides = array<i32>} : memref<144x256xbf16, #tpu.memory_space<vmem>>, vector<16x256xbf16>,
    %c255_i32 = arith.constant 255 : i32
    %28 = tpu.dynamic_rotate %1 by %c255_i32 dim 1 : vector<16x256xf32>, i32 -> vector<16x256xf32>
    %c5 = arith.constant 5 : index
    %c0_13 = arith.constant 0 : index
    %29 = vector.load %arg3[%c5, %c0_13] : memref<9x256xf32, #tpu.memory_space<vmem>>, vector<1x256xf32>
    %30 = vector.broadcast %29 : vector<1x256xf32> to vector<16x256xf32>
    %31 = arith.mulf %28, %30 : vector<16x256xf32>
    %32 = arith.truncf %31 : vector<16x256xf32> to vector<16x256xbf16>
    %c80 = arith.constant 80 : index
    %c0_14 = arith.constant 0 : index
    %33 = vector.load %arg6[%c80, %c0_14] : memref<144x256xbf16, #tpu.memory_space<vmem>>, vector<16x256xbf16>
    tpu.vector_store %arg6[%c80, %c0_14], %32 {strides = array<i32>} : memref<144x256xbf16, #tpu.memory_space<vmem>>, vector<16x256xbf16>,
    %c241_i32 = arith.constant 241 : i32
    %34 = tpu.dynamic_rotate %1 by %c241_i32 dim 1 : vector<16x256xf32>, i32 -> vector<16x256xf32>
    %c6 = arith.constant 6 : index
    %c0_15 = arith.constant 0 : index
    %35 = vector.load %arg3[%c6, %c0_15] : memref<9x256xf32, #tpu.memory_space<vmem>>, vector<1x256xf32>
    %36 = vector.broadcast %35 : vector<1x256xf32> to vector<16x256xf32>
    %37 = arith.mulf %34, %36 : vector<16x256xf32>
    %38 = arith.truncf %37 : vector<16x256xf32> to vector<16x256xbf16>
    %c96 = arith.constant 96 : index
    %c0_16 = arith.constant 0 : index
    %39 = vector.load %arg6[%c96, %c0_16] : memref<144x256xbf16, #tpu.memory_space<vmem>>, vector<16x256xbf16>
    tpu.vector_store %arg6[%c96, %c0_16], %38 {strides = array<i32>} : memref<144x256xbf16, #tpu.memory_space<vmem>>, vector<16x256xbf16>,
    %c240_i32 = arith.constant 240 : i32
    %40 = tpu.dynamic_rotate %1 by %c240_i32 dim 1 : vector<16x256xf32>, i32 -> vector<16x256xf32>
    %c7 = arith.constant 7 : index
    %c0_17 = arith.constant 0 : index
    %41 = vector.load %arg3[%c7, %c0_17] : memref<9x256xf32, #tpu.memory_space<vmem>>, vector<1x256xf32>
    %42 = vector.broadcast %41 : vector<1x256xf32> to vector<16x256xf32>
    %43 = arith.mulf %40, %42 : vector<16x256xf32>
    %44 = arith.truncf %43 : vector<16x256xf32> to vector<16x256xbf16>
    %c112 = arith.constant 112 : index
    %c0_18 = arith.constant 0 : index
    %45 = vector.load %arg6[%c112, %c0_18] : memref<144x256xbf16, #tpu.memory_space<vmem>>, vector<16x256xbf16>
    tpu.vector_store %arg6[%c112, %c0_18], %44 {strides = array<i32>} : memref<144x256xbf16, #tpu.memory_space<vmem>>, vector<16x256xbf16>,
    %c239_i32 = arith.constant 239 : i32
    %46 = tpu.dynamic_rotate %1 by %c239_i32 dim 1 : vector<16x256xf32>, i32 -> vector<16x256xf32>
    %c8 = arith.constant 8 : index
    %c0_19 = arith.constant 0 : index
    %47 = vector.load %arg3[%c8, %c0_19] : memref<9x256xf32, #tpu.memory_space<vmem>>, vector<1x256xf32>
    %48 = vector.broadcast %47 : vector<1x256xf32> to vector<16x256xf32>
    %49 = arith.mulf %46, %48 : vector<16x256xf32>
    %50 = arith.truncf %49 : vector<16x256xf32> to vector<16x256xbf16>
    %c128 = arith.constant 128 : index
    %c0_20 = arith.constant 0 : index
    %51 = vector.load %arg6[%c128, %c0_20] : memref<144x256xbf16, #tpu.memory_space<vmem>>, vector<16x256xbf16>
    tpu.vector_store %arg6[%c128, %c0_20], %50 {strides = array<i32>} : memref<144x256xbf16, #tpu.memory_space<vmem>>, vector<16x256xbf16>,
    %c0_21 = arith.constant 0 : index
    %c0_22 = arith.constant 0 : index
    %52 = vector.load %arg2[%c0_21, %c0_22] : memref<16x144xbf16, #tpu.memory_space<vmem>>, vector<16x144xbf16>
    %c0_23 = arith.constant 0 : index
    %c0_24 = arith.constant 0 : index
    %53 = vector.load %arg6[%c0_23, %c0_24] : memref<144x256xbf16, #tpu.memory_space<vmem>>, vector<144x256xbf16>
    %cst = arith.constant dense<0.000000e+00> : vector<16x256xf32>
    %54 = tpu.matmul %52, %53, %cst {dimension_numbers = #tpu.dot_dimension_numbers<[1], [0], [0], [1], [0, 0, 1, 1], [], []>} : vector<16x144xbf16>, vector<144x256xbf16>, vector<16x256xf32> -> vector<16x256xf32>
    %55 = arith.truncf %54 : vector<16x256xf32> to vector<16x256xbf16>
    %c0_25 = arith.constant 0 : index
    %c0_26 = arith.constant 0 : index
    %c0_27 = arith.constant 0 : index
    %56 = vector.load %arg4[%c0_25, %c0_26, %c0_27] : memref<1x16x256xbf16, #tpu.memory_space<vmem>>, vector<1x16x256xbf16>
    %57 = vector.shape_cast %56 : vector<1x16x256xbf16> to vector<16x256xbf16>
    %58 = vector.shape_cast %55 : vector<16x256xbf16> to vector<1x16x256xbf16>
    tpu.vector_store %arg4[%c0_25, %c0_26, %c0_27], %58 {strides = array<i32>} : memref<1x16x256xbf16, #tpu.memory_space<vmem>>, vector<1x16x256xbf16>,
    %cst_28 = arith.constant dense<0.000000e+00> : vector<16xf32>
    %59 = vector.multi_reduction <add>, %54, %cst_28 [1] : vector<16x256xf32> to vector<16xf32>
    %60 = vector.shape_cast %59 : vector<16xf32> to vector<16x1xf32>
    %61 = arith.mulf %54, %54 : vector<16x256xf32>
    %cst_29 = arith.constant dense<0.000000e+00> : vector<16xf32>
    %62 = vector.multi_reduction <add>, %61, %cst_29 [1] : vector<16x256xf32> to vector<16xf32>
    %63 = vector.shape_cast %62 : vector<16xf32> to vector<16x1xf32>
    %64 = tpu.concatenate %60, %63 in 1 : vector<16x1xf32>, vector<16x1xf32> -> vector<16x2xf32>
    %c0_30 = arith.constant 0 : index
    %c0_31 = arith.constant 0 : index
    %c0_32 = arith.constant 0 : index
    %65 = vector.load %arg5[%c0_30, %c0_31, %c0_32] : memref<1x16x2xf32, #tpu.memory_space<vmem>>, vector<1x16x2xf32>
    %66 = vector.shape_cast %65 : vector<1x16x2xf32> to vector<16x2xf32>
    %67 = vector.shape_cast %64 : vector<16x2xf32> to vector<1x16x2xf32>
    tpu.vector_store %arg5[%c0_30, %c0_31, %c0_32], %67 {strides = array<i32>} : memref<1x16x2xf32, #tpu.memory_space<vmem>>, vector<1x16x2xf32>,
    return
  }
  func.func @transform_0(%arg0: i32) -> (i32, i32, i32) {
    %c0_i32 = arith.constant 0 : i32
    %c0_i32_0 = arith.constant 0 : i32
    %c0_i32_1 = arith.constant 0 : i32
    return %arg0, %c0_i32, %c0_i32_0 : i32, i32, i32
  }
  func.func @transform_1(%arg0: i32) -> (i32, i32) {
    %c0_i32 = arith.constant 0 : i32
    %c0_i32_0 = arith.constant 0 : i32
    %c0_i32_1 = arith.constant 0 : i32
    return %c0_i32, %c0_i32_0 : i32, i32
  }
  func.func @transform_2(%arg0: i32) -> (i32, i32) {
    %c0_i32 = arith.constant 0 : i32
    %c0_i32_0 = arith.constant 0 : i32
    %c0_i32_1 = arith.constant 0 : i32
    return %c0_i32, %c0_i32_0 : i32, i32
  }
  func.func @transform_3(%arg0: i32) -> (i32, i32, i32) {
    %c0_i32 = arith.constant 0 : i32
    %c0_i32_0 = arith.constant 0 : i32
    %c0_i32_1 = arith.constant 0 : i32
    return %arg0, %c0_i32, %c0_i32_0 : i32, i32, i32
  }
  func.func @transform_4(%arg0: i32) -> (i32, i32, i32) {
    %c0_i32 = arith.constant 0 : i32
    %c0_i32_0 = arith.constant 0 : i32
    %c0_i32_1 = arith.constant 0 : i32
    return %arg0, %c0_i32, %c0_i32_0 : i32, i32, i32
  }
}

module attributes {stable_mosaic.version = 11 : i64} {
  func.func @conv2_kernel(%arg0: i32, %arg1: memref<1x16x256xbf16, #tpu.memory_space<vmem>>, %arg2: memref<16x1xf32, #tpu.memory_space<vmem>>, %arg3: memref<16x1xf32, #tpu.memory_space<vmem>>, %arg4: memref<16x144xbf16, #tpu.memory_space<vmem>>, %arg5: memref<9x256xf32, #tpu.memory_space<vmem>>, %arg6: memref<1x16x256xbf16, #tpu.memory_space<vmem>>, %arg7: memref<1x16x2xf32, #tpu.memory_space<vmem>>, %arg8: memref<144x256xbf16, #tpu.memory_space<vmem>>) attributes {dimension_semantics = [#tpu.dimension_semantics<parallel>], iteration_bounds = array<i64: 2>, scalar_prefetch = 0 : i64, scratch_operands = 1 : i64, tpu.core_type = #tpu.core_type<tc>, window_params = [{transform_indices = @transform_0, window_bounds = array<i64: 1, 16, 256>}, {pipeline_mode = #tpu.pipeline_mode<synchronous>, transform_indices = @transform_1, window_bounds = array<i64: 16, 1>}, {pipeline_mode = #tpu.pipeline_mode<synchronous>, transform_indices = @transform_2, window_bounds = array<i64: 16, 1>}, {pipeline_mode = #tpu.pipeline_mode<synchronous>, transform_indices = @transform_3, window_bounds = array<i64: 16, 144>}, {pipeline_mode = #tpu.pipeline_mode<synchronous>, transform_indices = @transform_4, window_bounds = array<i64: 9, 256>}, {transform_indices = @transform_5, window_bounds = array<i64: 1, 16, 256>}, {transform_indices = @transform_6, window_bounds = array<i64: 1, 16, 2>}]} {
    %c0 = arith.constant 0 : index
    %c0_0 = arith.constant 0 : index
    %0 = vector.load %arg2[%c0, %c0_0] : memref<16x1xf32, #tpu.memory_space<vmem>>, vector<16x1xf32>
    %c0_1 = arith.constant 0 : index
    %c0_2 = arith.constant 0 : index
    %1 = vector.load %arg3[%c0_1, %c0_2] : memref<16x1xf32, #tpu.memory_space<vmem>>, vector<16x1xf32>
    %c0_3 = arith.constant 0 : index
    %c0_4 = arith.constant 0 : index
    %c0_5 = arith.constant 0 : index
    %2 = vector.load %arg1[%c0_3, %c0_4, %c0_5] : memref<1x16x256xbf16, #tpu.memory_space<vmem>>, vector<1x16x256xbf16>
    %3 = vector.shape_cast %2 : vector<1x16x256xbf16> to vector<16x256xbf16>
    %4 = arith.extf %3 : vector<16x256xbf16> to vector<16x256xf32>
    %5 = vector.broadcast %0 : vector<16x1xf32> to vector<16x256xf32>
    %6 = arith.mulf %4, %5 : vector<16x256xf32>
    %7 = vector.broadcast %1 : vector<16x1xf32> to vector<16x256xf32>
    %8 = arith.addf %6, %7 : vector<16x256xf32>
    %cst = arith.constant 0.000000e+00 : f32
    %9 = vector.broadcast %cst : f32 to vector<16x256xf32>
    %10 = arith.maximumf %8, %9 : vector<16x256xf32>
    %c17_i32 = arith.constant 17 : i32
    %11 = tpu.dynamic_rotate %10 by %c17_i32 dim 1 : vector<16x256xf32>, i32 -> vector<16x256xf32>
    %c0_6 = arith.constant 0 : index
    %c0_7 = arith.constant 0 : index
    %12 = vector.load %arg5[%c0_6, %c0_7] : memref<9x256xf32, #tpu.memory_space<vmem>>, vector<1x256xf32>
    %13 = vector.broadcast %12 : vector<1x256xf32> to vector<16x256xf32>
    %14 = arith.mulf %11, %13 : vector<16x256xf32>
    %15 = arith.truncf %14 : vector<16x256xf32> to vector<16x256xbf16>
    %c0_8 = arith.constant 0 : index
    %c0_9 = arith.constant 0 : index
    %16 = vector.load %arg8[%c0_8, %c0_9] : memref<144x256xbf16, #tpu.memory_space<vmem>>, vector<16x256xbf16>
    tpu.vector_store %arg8[%c0_8, %c0_9], %15 {strides = array<i32>} : memref<144x256xbf16, #tpu.memory_space<vmem>>, vector<16x256xbf16>,
    %c16_i32 = arith.constant 16 : i32
    %17 = tpu.dynamic_rotate %10 by %c16_i32 dim 1 : vector<16x256xf32>, i32 -> vector<16x256xf32>
    %c1 = arith.constant 1 : index
    %c0_10 = arith.constant 0 : index
    %18 = vector.load %arg5[%c1, %c0_10] : memref<9x256xf32, #tpu.memory_space<vmem>>, vector<1x256xf32>
    %19 = vector.broadcast %18 : vector<1x256xf32> to vector<16x256xf32>
    %20 = arith.mulf %17, %19 : vector<16x256xf32>
    %21 = arith.truncf %20 : vector<16x256xf32> to vector<16x256xbf16>
    %c16 = arith.constant 16 : index
    %c0_11 = arith.constant 0 : index
    %22 = vector.load %arg8[%c16, %c0_11] : memref<144x256xbf16, #tpu.memory_space<vmem>>, vector<16x256xbf16>
    tpu.vector_store %arg8[%c16, %c0_11], %21 {strides = array<i32>} : memref<144x256xbf16, #tpu.memory_space<vmem>>, vector<16x256xbf16>,
    %c15_i32 = arith.constant 15 : i32
    %23 = tpu.dynamic_rotate %10 by %c15_i32 dim 1 : vector<16x256xf32>, i32 -> vector<16x256xf32>
    %c2 = arith.constant 2 : index
    %c0_12 = arith.constant 0 : index
    %24 = vector.load %arg5[%c2, %c0_12] : memref<9x256xf32, #tpu.memory_space<vmem>>, vector<1x256xf32>
    %25 = vector.broadcast %24 : vector<1x256xf32> to vector<16x256xf32>
    %26 = arith.mulf %23, %25 : vector<16x256xf32>
    %27 = arith.truncf %26 : vector<16x256xf32> to vector<16x256xbf16>
    %c32 = arith.constant 32 : index
    %c0_13 = arith.constant 0 : index
    %28 = vector.load %arg8[%c32, %c0_13] : memref<144x256xbf16, #tpu.memory_space<vmem>>, vector<16x256xbf16>
    tpu.vector_store %arg8[%c32, %c0_13], %27 {strides = array<i32>} : memref<144x256xbf16, #tpu.memory_space<vmem>>, vector<16x256xbf16>,
    %c1_i32 = arith.constant 1 : i32
    %29 = tpu.dynamic_rotate %10 by %c1_i32 dim 1 : vector<16x256xf32>, i32 -> vector<16x256xf32>
    %c3 = arith.constant 3 : index
    %c0_14 = arith.constant 0 : index
    %30 = vector.load %arg5[%c3, %c0_14] : memref<9x256xf32, #tpu.memory_space<vmem>>, vector<1x256xf32>
    %31 = vector.broadcast %30 : vector<1x256xf32> to vector<16x256xf32>
    %32 = arith.mulf %29, %31 : vector<16x256xf32>
    %33 = arith.truncf %32 : vector<16x256xf32> to vector<16x256xbf16>
    %c48 = arith.constant 48 : index
    %c0_15 = arith.constant 0 : index
    %34 = vector.load %arg8[%c48, %c0_15] : memref<144x256xbf16, #tpu.memory_space<vmem>>, vector<16x256xbf16>
    tpu.vector_store %arg8[%c48, %c0_15], %33 {strides = array<i32>} : memref<144x256xbf16, #tpu.memory_space<vmem>>, vector<16x256xbf16>,
    %35 = arith.truncf %10 : vector<16x256xf32> to vector<16x256xbf16>
    %c64 = arith.constant 64 : index
    %c0_16 = arith.constant 0 : index
    %36 = vector.load %arg8[%c64, %c0_16] : memref<144x256xbf16, #tpu.memory_space<vmem>>, vector<16x256xbf16>
    tpu.vector_store %arg8[%c64, %c0_16], %35 {strides = array<i32>} : memref<144x256xbf16, #tpu.memory_space<vmem>>, vector<16x256xbf16>,
    %c255_i32 = arith.constant 255 : i32
    %37 = tpu.dynamic_rotate %10 by %c255_i32 dim 1 : vector<16x256xf32>, i32 -> vector<16x256xf32>
    %c5 = arith.constant 5 : index
    %c0_17 = arith.constant 0 : index
    %38 = vector.load %arg5[%c5, %c0_17] : memref<9x256xf32, #tpu.memory_space<vmem>>, vector<1x256xf32>
    %39 = vector.broadcast %38 : vector<1x256xf32> to vector<16x256xf32>
    %40 = arith.mulf %37, %39 : vector<16x256xf32>
    %41 = arith.truncf %40 : vector<16x256xf32> to vector<16x256xbf16>
    %c80 = arith.constant 80 : index
    %c0_18 = arith.constant 0 : index
    %42 = vector.load %arg8[%c80, %c0_18] : memref<144x256xbf16, #tpu.memory_space<vmem>>, vector<16x256xbf16>
    tpu.vector_store %arg8[%c80, %c0_18], %41 {strides = array<i32>} : memref<144x256xbf16, #tpu.memory_space<vmem>>, vector<16x256xbf16>,
    %c241_i32 = arith.constant 241 : i32
    %43 = tpu.dynamic_rotate %10 by %c241_i32 dim 1 : vector<16x256xf32>, i32 -> vector<16x256xf32>
    %c6 = arith.constant 6 : index
    %c0_19 = arith.constant 0 : index
    %44 = vector.load %arg5[%c6, %c0_19] : memref<9x256xf32, #tpu.memory_space<vmem>>, vector<1x256xf32>
    %45 = vector.broadcast %44 : vector<1x256xf32> to vector<16x256xf32>
    %46 = arith.mulf %43, %45 : vector<16x256xf32>
    %47 = arith.truncf %46 : vector<16x256xf32> to vector<16x256xbf16>
    %c96 = arith.constant 96 : index
    %c0_20 = arith.constant 0 : index
    %48 = vector.load %arg8[%c96, %c0_20] : memref<144x256xbf16, #tpu.memory_space<vmem>>, vector<16x256xbf16>
    tpu.vector_store %arg8[%c96, %c0_20], %47 {strides = array<i32>} : memref<144x256xbf16, #tpu.memory_space<vmem>>, vector<16x256xbf16>,
    %c240_i32 = arith.constant 240 : i32
    %49 = tpu.dynamic_rotate %10 by %c240_i32 dim 1 : vector<16x256xf32>, i32 -> vector<16x256xf32>
    %c7 = arith.constant 7 : index
    %c0_21 = arith.constant 0 : index
    %50 = vector.load %arg5[%c7, %c0_21] : memref<9x256xf32, #tpu.memory_space<vmem>>, vector<1x256xf32>
    %51 = vector.broadcast %50 : vector<1x256xf32> to vector<16x256xf32>
    %52 = arith.mulf %49, %51 : vector<16x256xf32>
    %53 = arith.truncf %52 : vector<16x256xf32> to vector<16x256xbf16>
    %c112 = arith.constant 112 : index
    %c0_22 = arith.constant 0 : index
    %54 = vector.load %arg8[%c112, %c0_22] : memref<144x256xbf16, #tpu.memory_space<vmem>>, vector<16x256xbf16>
    tpu.vector_store %arg8[%c112, %c0_22], %53 {strides = array<i32>} : memref<144x256xbf16, #tpu.memory_space<vmem>>, vector<16x256xbf16>,
    %c239_i32 = arith.constant 239 : i32
    %55 = tpu.dynamic_rotate %10 by %c239_i32 dim 1 : vector<16x256xf32>, i32 -> vector<16x256xf32>
    %c8 = arith.constant 8 : index
    %c0_23 = arith.constant 0 : index
    %56 = vector.load %arg5[%c8, %c0_23] : memref<9x256xf32, #tpu.memory_space<vmem>>, vector<1x256xf32>
    %57 = vector.broadcast %56 : vector<1x256xf32> to vector<16x256xf32>
    %58 = arith.mulf %55, %57 : vector<16x256xf32>
    %59 = arith.truncf %58 : vector<16x256xf32> to vector<16x256xbf16>
    %c128 = arith.constant 128 : index
    %c0_24 = arith.constant 0 : index
    %60 = vector.load %arg8[%c128, %c0_24] : memref<144x256xbf16, #tpu.memory_space<vmem>>, vector<16x256xbf16>
    tpu.vector_store %arg8[%c128, %c0_24], %59 {strides = array<i32>} : memref<144x256xbf16, #tpu.memory_space<vmem>>, vector<16x256xbf16>,
    %c0_25 = arith.constant 0 : index
    %c0_26 = arith.constant 0 : index
    %61 = vector.load %arg4[%c0_25, %c0_26] : memref<16x144xbf16, #tpu.memory_space<vmem>>, vector<16x144xbf16>
    %c0_27 = arith.constant 0 : index
    %c0_28 = arith.constant 0 : index
    %62 = vector.load %arg8[%c0_27, %c0_28] : memref<144x256xbf16, #tpu.memory_space<vmem>>, vector<144x256xbf16>
    %cst_29 = arith.constant dense<0.000000e+00> : vector<16x256xf32>
    %63 = tpu.matmul %61, %62, %cst_29 {dimension_numbers = #tpu.dot_dimension_numbers<[1], [0], [0], [1], [0, 0, 1, 1], [], []>} : vector<16x144xbf16>, vector<144x256xbf16>, vector<16x256xf32> -> vector<16x256xf32>
    %64 = arith.truncf %63 : vector<16x256xf32> to vector<16x256xbf16>
    %c0_30 = arith.constant 0 : index
    %c0_31 = arith.constant 0 : index
    %c0_32 = arith.constant 0 : index
    %65 = vector.load %arg6[%c0_30, %c0_31, %c0_32] : memref<1x16x256xbf16, #tpu.memory_space<vmem>>, vector<1x16x256xbf16>
    %66 = vector.shape_cast %65 : vector<1x16x256xbf16> to vector<16x256xbf16>
    %67 = vector.shape_cast %64 : vector<16x256xbf16> to vector<1x16x256xbf16>
    tpu.vector_store %arg6[%c0_30, %c0_31, %c0_32], %67 {strides = array<i32>} : memref<1x16x256xbf16, #tpu.memory_space<vmem>>, vector<1x16x256xbf16>,
    %cst_33 = arith.constant dense<0.000000e+00> : vector<16xf32>
    %68 = vector.multi_reduction <add>, %63, %cst_33 [1] : vector<16x256xf32> to vector<16xf32>
    %69 = vector.shape_cast %68 : vector<16xf32> to vector<16x1xf32>
    %70 = arith.mulf %63, %63 : vector<16x256xf32>
    %cst_34 = arith.constant dense<0.000000e+00> : vector<16xf32>
    %71 = vector.multi_reduction <add>, %70, %cst_34 [1] : vector<16x256xf32> to vector<16xf32>
    %72 = vector.shape_cast %71 : vector<16xf32> to vector<16x1xf32>
    %73 = tpu.concatenate %69, %72 in 1 : vector<16x1xf32>, vector<16x1xf32> -> vector<16x2xf32>
    %c0_35 = arith.constant 0 : index
    %c0_36 = arith.constant 0 : index
    %c0_37 = arith.constant 0 : index
    %74 = vector.load %arg7[%c0_35, %c0_36, %c0_37] : memref<1x16x2xf32, #tpu.memory_space<vmem>>, vector<1x16x2xf32>
    %75 = vector.shape_cast %74 : vector<1x16x2xf32> to vector<16x2xf32>
    %76 = vector.shape_cast %73 : vector<16x2xf32> to vector<1x16x2xf32>
    tpu.vector_store %arg7[%c0_35, %c0_36, %c0_37], %76 {strides = array<i32>} : memref<1x16x2xf32, #tpu.memory_space<vmem>>, vector<1x16x2xf32>,
    return
  }
  func.func @transform_0(%arg0: i32) -> (i32, i32, i32) {
    %c0_i32 = arith.constant 0 : i32
    %c0_i32_0 = arith.constant 0 : i32
    %c0_i32_1 = arith.constant 0 : i32
    return %arg0, %c0_i32, %c0_i32_0 : i32, i32, i32
  }
  func.func @transform_1(%arg0: i32) -> (i32, i32) {
    %c0_i32 = arith.constant 0 : i32
    %c0_i32_0 = arith.constant 0 : i32
    %c0_i32_1 = arith.constant 0 : i32
    return %c0_i32, %c0_i32_0 : i32, i32
  }
  func.func @transform_2(%arg0: i32) -> (i32, i32) {
    %c0_i32 = arith.constant 0 : i32
    %c0_i32_0 = arith.constant 0 : i32
    %c0_i32_1 = arith.constant 0 : i32
    return %c0_i32, %c0_i32_0 : i32, i32
  }
  func.func @transform_3(%arg0: i32) -> (i32, i32) {
    %c0_i32 = arith.constant 0 : i32
    %c0_i32_0 = arith.constant 0 : i32
    %c0_i32_1 = arith.constant 0 : i32
    return %c0_i32, %c0_i32_0 : i32, i32
  }
  func.func @transform_4(%arg0: i32) -> (i32, i32) {
    %c0_i32 = arith.constant 0 : i32
    %c0_i32_0 = arith.constant 0 : i32
    %c0_i32_1 = arith.constant 0 : i32
    return %c0_i32, %c0_i32_0 : i32, i32
  }
  func.func @transform_5(%arg0: i32) -> (i32, i32, i32) {
    %c0_i32 = arith.constant 0 : i32
    %c0_i32_0 = arith.constant 0 : i32
    %c0_i32_1 = arith.constant 0 : i32
    return %arg0, %c0_i32, %c0_i32_0 : i32, i32, i32
  }
  func.func @transform_6(%arg0: i32) -> (i32, i32, i32) {
    %c0_i32 = arith.constant 0 : i32
    %c0_i32_0 = arith.constant 0 : i32
    %c0_i32_1 = arith.constant 0 : i32
    return %arg0, %c0_i32, %c0_i32_0 : i32, i32, i32
  }
}

module attributes {stable_mosaic.version = 11 : i64} {
  func.func @final_kernel(%arg0: i32, %arg1: memref<1x16x256xbf16, #tpu.memory_space<vmem>>, %arg2: memref<16x1xf32, #tpu.memory_space<vmem>>, %arg3: memref<16x1xf32, #tpu.memory_space<vmem>>, %arg4: memref<1x16x256xf32, #tpu.memory_space<vmem>>, %arg5: memref<1x16x256xf32, #tpu.memory_space<vmem>>) attributes {dimension_semantics = [#tpu.dimension_semantics<parallel>], iteration_bounds = array<i64: 2>, scalar_prefetch = 0 : i64, scratch_operands = 0 : i64, tpu.core_type = #tpu.core_type<tc>, window_params = [{transform_indices = @transform_0, window_bounds = array<i64: 1, 16, 256>}, {pipeline_mode = #tpu.pipeline_mode<synchronous>, transform_indices = @transform_1, window_bounds = array<i64: 16, 1>}, {pipeline_mode = #tpu.pipeline_mode<synchronous>, transform_indices = @transform_2, window_bounds = array<i64: 16, 1>}, {transform_indices = @transform_3, window_bounds = array<i64: 1, 16, 256>}, {transform_indices = @transform_4, window_bounds = array<i64: 1, 16, 256>}]} {
    %c0 = arith.constant 0 : index
    %c0_0 = arith.constant 0 : index
    %0 = vector.load %arg2[%c0, %c0_0] : memref<16x1xf32, #tpu.memory_space<vmem>>, vector<16x1xf32>
    %c0_1 = arith.constant 0 : index
    %c0_2 = arith.constant 0 : index
    %1 = vector.load %arg3[%c0_1, %c0_2] : memref<16x1xf32, #tpu.memory_space<vmem>>, vector<16x1xf32>
    %c0_3 = arith.constant 0 : index
    %c0_4 = arith.constant 0 : index
    %c0_5 = arith.constant 0 : index
    %2 = vector.load %arg1[%c0_3, %c0_4, %c0_5] : memref<1x16x256xbf16, #tpu.memory_space<vmem>>, vector<1x16x256xbf16>
    %3 = vector.shape_cast %2 : vector<1x16x256xbf16> to vector<16x256xbf16>
    %4 = arith.extf %3 : vector<16x256xbf16> to vector<16x256xf32>
    %5 = vector.broadcast %0 : vector<16x1xf32> to vector<16x256xf32>
    %6 = arith.mulf %4, %5 : vector<16x256xf32>
    %7 = vector.broadcast %1 : vector<16x1xf32> to vector<16x256xf32>
    %8 = arith.addf %6, %7 : vector<16x256xf32>
    %c0_6 = arith.constant 0 : index
    %c0_7 = arith.constant 0 : index
    %c0_8 = arith.constant 0 : index
    %9 = vector.load %arg4[%c0_6, %c0_7, %c0_8] : memref<1x16x256xf32, #tpu.memory_space<vmem>>, vector<1x16x256xf32>
    %10 = vector.shape_cast %9 : vector<1x16x256xf32> to vector<16x256xf32>
    %11 = arith.addf %8, %10 : vector<16x256xf32>
    %cst = arith.constant 0.000000e+00 : f32
    %12 = vector.broadcast %cst : f32 to vector<16x256xf32>
    %13 = arith.maximumf %11, %12 : vector<16x256xf32>
    %c0_9 = arith.constant 0 : index
    %c0_10 = arith.constant 0 : index
    %c0_11 = arith.constant 0 : index
    %14 = vector.load %arg5[%c0_9, %c0_10, %c0_11] : memref<1x16x256xf32, #tpu.memory_space<vmem>>, vector<1x16x256xf32>
    %15 = vector.shape_cast %14 : vector<1x16x256xf32> to vector<16x256xf32>
    %16 = vector.shape_cast %13 : vector<16x256xf32> to vector<1x16x256xf32>
    tpu.vector_store %arg5[%c0_9, %c0_10, %c0_11], %16 {strides = array<i32>} : memref<1x16x256xf32, #tpu.memory_space<vmem>>, vector<1x16x256xf32>,
    return
  }
  func.func @transform_0(%arg0: i32) -> (i32, i32, i32) {
    %c0_i32 = arith.constant 0 : i32
    %c0_i32_0 = arith.constant 0 : i32
    %c0_i32_1 = arith.constant 0 : i32
    return %arg0, %c0_i32, %c0_i32_0 : i32, i32, i32
  }
  func.func @transform_1(%arg0: i32) -> (i32, i32) {
    %c0_i32 = arith.constant 0 : i32
    %c0_i32_0 = arith.constant 0 : i32
    %c0_i32_1 = arith.constant 0 : i32
    return %c0_i32, %c0_i32_0 : i32, i32
  }
  func.func @transform_2(%arg0: i32) -> (i32, i32) {
    %c0_i32 = arith.constant 0 : i32
    %c0_i32_0 = arith.constant 0 : i32
    %c0_i32_1 = arith.constant 0 : i32
    return %c0_i32, %c0_i32_0 : i32, i32
  }
  func.func @transform_3(%arg0: i32) -> (i32, i32, i32) {
    %c0_i32 = arith.constant 0 : i32
    %c0_i32_0 = arith.constant 0 : i32
    %c0_i32_1 = arith.constant 0 : i32
    return %arg0, %c0_i32, %c0_i32_0 : i32, i32, i32
  }
  func.func @transform_4(%arg0: i32) -> (i32, i32, i32) {
    %c0_i32 = arith.constant 0 : i32
    %c0_i32_0 = arith.constant 0 : i32
    %c0_i32_1 = arith.constant 0 : i32
    return %arg0, %c0_i32, %c0_i32_0 : i32, i32, i32
  }
}

</mosaic_0001>

<llo_original>
// kernel: basic_block.5
$region0: #{basic_block.5}
  #allocation0 [shape = 'u32[]', space=smem, size = 0x4, offset = 0x4, fixed_abs, tag = 'smem constant byte address 0x4 - core index']
  #allocation1 [shape = 'u32[72,128]{1,0:T(1,128)}', space=vmem, size = 0x9000, scoped, tag = 'internal scratch']
  %s0 = inlined_call_operand.vmem [shape: bf16[2,16,256], index: 0, kind: input, shape index: {}]
  %s1 = inlined_call_operand.vmem [shape: f32[16,1], index: 1, kind: input, shape index: {}]
  %s2 = inlined_call_operand.vmem [shape: f32[16,1], index: 2, kind: input, shape index: {}]
  %s3 = inlined_call_operand.vmem [shape: f32[2,16,256], index: 3, kind: input, shape index: {}]
  %s4 = inlined_call_operand.vmem [shape: f32[2,16,256], index: 4, kind: output, shape index: {}]
  %s5 = sld [smem:[#allocation0]]
  $region49: #{basic_block.5} parent=0
    _
  %s7 = ssub.s32 1, %s5
  %s8 = scalar_select 0, %s7, %s5
  loop: start=0, step=1, limit=4
  $region2: #{basic_block.5} parent=0 // loop_pre_header
    _
  $region3: #{basic_block.5} parent=0 // loop_header
    %s10 = sphi 0, %s14
    %p11 = scmp.ge.s32.totalorder %s10, 4
    %s20 = sphi 0, %s22
    %s23 = sphi 0, %s20
    %s24 = sphi 0, %s23
    %s40 = sphi 0, %s24
    %s44 = sphi 0, %s44
    %s46 = sphi 0, %s44
    %s47 = sphi 0, %s46
    %s61 = sphi 0, %s47
    %s65 = sphi 0, %s65
    %s67 = sphi 0, %s65
    %s68 = sphi 0, %s67
    %s82 = sphi 0, %s68
    %s88 = sphi 0, %s90
    %s91 = sphi 0, %s88
    %s92 = sphi 0, %s91
    %s108 = sphi 0, %s92
    %s114 = sphi 0, %s116
    %s117 = sphi 0, %s114
    %s118 = sphi 0, %s117
    %s134 = sphi 0, %s118
  $region4: #{basic_block.5} parent=0 // loop_header_branch
    %13 = sbr.rel (%p11) target = $region8
  $region5: #{basic_block.5} parent=0 // loop_body
    %s15 = ssub.s32 %s10, 1
    %s16 = ssub.s32 %s10, 2
    %s17 = sadd.s32 %s10, 1
    %s18 = ssub.s32 %s10, %s17
    %p19 = scmp.eq.s32.totalorder %s18, 0
    %s21 = sadd.s32 %s20, 1
    %s22 = scalar_select %p19, %s20, %s21
    %p25 = pneg %p19
    %p26 = scmp.eq.s32.totalorder %s10, 1
    %p27 = por %p25, %p26
    %p28 = scmp.ne.s32.totalorder %s20, %s23
    %p29 = scmp.eq.s32.totalorder %s10, 0
    %p30 = por %p28, %p29
    %p31 = scmp.ne.s32.totalorder %s20, %s23
    %p32 = scmp.eq.s32.totalorder %s15, 1
    %p33 = por %p31, %p32
    %p34 = scmp.ne.s32.totalorder %s23, %s24
    %p35 = scmp.eq.s32.totalorder %s15, 0
    %p36 = por %p34, %p35
    %p37 = scmp.ne.s32.totalorder %s23, %s24
    %p38 = scmp.eq.s32.totalorder %s16, 1
    %p39 = por %p37, %p38
    %p41 = scmp.ne.s32.totalorder %s24, %s40
    %p42 = scmp.eq.s32.totalorder %s16, 0
    %p43 = por %p41, %p42
    %s45 = sadd.s32 %s44, 1
    %p48 = scmp.eq.s32.totalorder %s10, 1
    %p49 = scmp.ne.s32.totalorder %s44, %s46
    %p50 = scmp.eq.s32.totalorder %s10, 0
    %p51 = por %p49, %p50
    %p52 = scmp.ne.s32.totalorder %s44, %s46
    %p53 = scmp.eq.s32.totalorder %s15, 1
    %p54 = por %p52, %p53
    %p55 = scmp.ne.s32.totalorder %s46, %s47
    %p56 = scmp.eq.s32.totalorder %s15, 0
    %p57 = por %p55, %p56
    %p58 = scmp.ne.s32.totalorder %s46, %s47
    %p59 = scmp.eq.s32.totalorder %s16, 1
    %p60 = por %p58, %p59
    %p62 = scmp.ne.s32.totalorder %s47, %s61
    %p63 = scmp.eq.s32.totalorder %s16, 0
    %p64 = por %p62, %p63
    %s66 = sadd.s32 %s65, 1
    %p69 = scmp.eq.s32.totalorder %s10, 1
    %p70 = scmp.ne.s32.totalorder %s65, %s67
    %p71 = scmp.eq.s32.totalorder %s10, 0
    %p72 = por %p70, %p71
    %p73 = scmp.ne.s32.totalorder %s65, %s67
    %p74 = scmp.eq.s32.totalorder %s15, 1
    %p75 = por %p73, %p74
    %p76 = scmp.ne.s32.totalorder %s67, %s68
    %p77 = scmp.eq.s32.totalorder %s15, 0
    %p78 = por %p76, %p77
    %p79 = scmp.ne.s32.totalorder %s67, %s68
    %p80 = scmp.eq.s32.totalorder %s16, 1
    %p81 = por %p79, %p80
    %p83 = scmp.ne.s32.totalorder %s68, %s82
    %p84 = scmp.eq.s32.totalorder %s16, 0
    %p85 = por %p83, %p84
    %s86 = ssub.s32 %s10, %s17
    %p87 = scmp.eq.s32.totalorder %s86, 0
    %s89 = sadd.s32 %s88, 1
    %s90 = scalar_select %p87, %s88, %s89
    %p93 = pneg %p87
    %p94 = scmp.eq.s32.totalorder %s10, 1
    %p95 = por %p93, %p94
    %p96 = scmp.ne.s32.totalorder %s88, %s91
    %p97 = scmp.eq.s32.totalorder %s10, 0
    %p98 = por %p96, %p97
    %p99 = scmp.ne.s32.totalorder %s88, %s91
    %p100 = scmp.eq.s32.totalorder %s15, 1
    %p101 = por %p99, %p100
    %p102 = scmp.ne.s32.totalorder %s91, %s92
    %p103 = scmp.eq.s32.totalorder %s15, 0
    %p104 = por %p102, %p103
    %p105 = scmp.ne.s32.totalorder %s91, %s92
    %p106 = scmp.eq.s32.totalorder %s16, 1
    %p107 = por %p105, %p106
    %p109 = scmp.ne.s32.totalorder %s92, %s108
    %p110 = scmp.eq.s32.totalorder %s16, 0
    %p111 = por %p109, %p110
    %s112 = ssub.s32 %s10, %s17
    %p113 = scmp.eq.s32.totalorder %s112, 0
    %s115 = sadd.s32 %s114, 1
    %s116 = scalar_select %p113, %s114, %s115
    %p119 = pneg %p113
    %p120 = scmp.eq.s32.totalorder %s10, 1
    %p121 = por %p119, %p120
    %p122 = scmp.ne.s32.totalorder %s114, %s117
    %p123 = scmp.eq.s32.totalorder %s10, 0
    %p124 = por %p122, %p123
    %p125 = scmp.ne.s32.totalorder %s114, %s117
    %p126 = scmp.eq.s32.totalorder %s15, 1
    %p127 = por %p125, %p126
    %p128 = scmp.ne.s32.totalorder %s117, %s118
    %p129 = scmp.eq.s32.totalorder %s15, 0
    %p130 = por %p128, %p129
    %p131 = scmp.ne.s32.totalorder %s117, %s118
    %p132 = scmp.eq.s32.totalorder %s16, 1
    %p133 = por %p131, %p132
    %p135 = scmp.ne.s32.totalorder %s118, %s134
    %p136 = scmp.eq.s32.totalorder %s16, 0
    %p137 = por %p135, %p136
    %p138 = scmp.le.s32.totalorder 1, %s10
    %p139 = scmp.lt.s32.totalorder %s10, 3
    %p140 = pnand %p138, %p139
    %p141 = pneg %p140
    // Predicated region
    $region9: #{basic_block.5} parent=5 // pred_check
      _
    $region10: #{basic_block.5} parent=5 // pred_check_branch
      %143 = sbr.rel (%p140) target = $region12
    $region11: #{basic_block.5} parent=5 // pred_region
      %s144 = ssub.s32 %s10, 1
      // Predicated region
      $region13: #{basic_block.5} parent=11 // pred_check
        %p145 = pneg %p57
      $region14: #{basic_block.5} parent=11 // pred_check_branch
        %147 = sbr.rel (%p145) target = $region16
      $region15: #{basic_block.5} parent=11 // pred_region
        _
      $region16: #{basic_block.5} parent=11 // pred_fallthru
        _
      // Predicated region
      $region17: #{basic_block.5} parent=11 // pred_check
        %p148 = pneg %p78
      $region18: #{basic_block.5} parent=11 // pred_check_branch
        %150 = sbr.rel (%p148) target = $region20
      $region19: #{basic_block.5} parent=11 // pred_region
        _
      $region20: #{basic_block.5} parent=11 // pred_fallthru
        _
    $region12: #{basic_block.5} parent=5 // pred_fallthru
      _
    %p151 = scmp.lt.s32.totalorder %s10, 2
    // Predicated region
    $region21: #{basic_block.5} parent=5 // pred_check
      %p152 = pneg %p151
    $region22: #{basic_block.5} parent=5 // pred_check_branch
      %154 = sbr.rel (%p152) target = $region24
    $region23: #{basic_block.5} parent=5 // pred_region
      // Predicated region
      $region25: #{basic_block.5} parent=23 // pred_check
        %p155 = pneg %p30
      $region26: #{basic_block.5} parent=23 // pred_check_branch
        %157 = sbr.rel (%p155) target = $region28
      $region27: #{basic_block.5} parent=23 // pred_region
        %p158 = scmp.lt.s32.totalorder %s10, 1
        %s159 = scalar_select %p158, %s10, 1
        %s160 = smul.addr %s159, 4
        %s161 = smul.addr %s160, 4
        %s162 = scalar_lea.vmem %s0, %s161
      $region28: #{basic_block.5} parent=23 // pred_fallthru
        _
      // Predicated region
      $region29: #{basic_block.5} parent=23 // pred_check
        %p163 = pneg %p98
      $region30: #{basic_block.5} parent=23 // pred_check_branch
        %165 = sbr.rel (%p163) target = $region32
      $region31: #{basic_block.5} parent=23 // pred_region
        %p166 = scmp.lt.s32.totalorder %s10, 1
        %s167 = scalar_select %p166, %s10, 1
        %s168 = smul.addr %s167, 4
        %s169 = smul.addr %s168, 8
        %s170 = scalar_lea.vmem %s3, %s169
      $region32: #{basic_block.5} parent=23 // pred_fallthru
        _
    $region24: #{basic_block.5} parent=5 // pred_fallthru
      _
    %p171 = scmp.le.s32.totalorder 1, %s10
    %p172 = scmp.lt.s32.totalorder %s10, 3
    %p173 = pnand %p171, %p172
    %p174 = pneg %p173
    // Predicated region
    $region33: #{basic_block.5} parent=5 // pred_check
      _
    $region34: #{basic_block.5} parent=5 // pred_check_branch
      %176 = sbr.rel (%p173) target = $region36
    $region35: #{basic_block.5} parent=5 // pred_region
      %s177 = ssub.s32 %s10, 1
      %p178 = scmp.lt.s32.totalorder %s15, 1
      %s179 = scalar_select %p178, %s15, 1
      %s180 = smul.addr %s179, 4
      %s181 = smul.addr %s180, 4
      %s182 = scalar_lea.vmem %s0, %s181
      %p183 = pneg %p36
      %p184 = pneg %p33
      %p185 = pneg %p57
      %p186 = pneg %p54
      %p187 = pneg %p78
      %p188 = pneg %p75
      %p189 = scmp.lt.s32.totalorder %s15, 1
      %s190 = scalar_select %p189, %s15, 1
      %s191 = smul.addr %s190, 4
      %s192 = smul.addr %s191, 8
      %s193 = scalar_lea.vmem %s3, %s192
      %p194 = pneg %p104
      %p195 = pneg %p101
      %p196 = pneg %p130
      %p197 = pneg %p127
      %p198 = scmp.lt.s32.totalorder %s15, 1
      %s199 = scalar_select %p198, %s15, 1
      %s200 = smul.addr %s199, 4
      %s201 = smul.addr %s200, 8
      %s202 = scalar_lea.vmem %s4, %s201
      %p203 = scmp.lt.s32.totalorder %s15, 1
      %s204 = scalar_select %p203, %s15, 1
      %s205 = smul.addr %s204, 4
      %s206 = smul.addr %s205, 4
      %s207 = scalar_lea.vmem %s0, %s206
      %p208 = scmp.lt.s32.totalorder %s15, 1
      %s209 = scalar_select %p208, %s15, 1
      %s210 = smul.addr %s209, 4
      %s211 = smul.addr %s210, 8
      %s212 = scalar_lea.vmem %s3, %s211
      %p213 = scmp.lt.s32.totalorder %s15, 1
      %s214 = scalar_select %p213, %s15, 1
      %s215 = smul.addr %s214, 4
      %s216 = smul.addr %s215, 8
      %s217 = scalar_lea.vmem %s4, %s216
      %v218 = vld [vmem:[%s1] sm:$0xff]
      %v219 = vld [vmem:[%s1 + $0x8] sm:$0xff]
      %v220 = vld [vmem:[%s2] sm:$0xff]
      %v221 = vld [vmem:[%s2 + $0x8] sm:$0xff]
      %v222 = vld [vmem:[%s207] sm:$0xff]
      %v223 = vld [vmem:[%s207 + $0x8] sm:$0xff]
      %v224 = vunpack.c.l.bf16 %v222
      %v225 = vunpack.c.h.bf16 %v222
      %v226 = vunpack.c.l.bf16 %v223
      %v227 = vunpack.c.h.bf16 %v223
      %229 = vset.pattern.permute.xlu0 0
      %230 = vperm.xlu0 %229, %v218
      %v231 = vpop.permute.xlu0 %230
      %234 = vset.pattern.permute.xlu0 0
      %235 = vperm.xlu0 %234, %v219
      %v236 = vpop.permute.xlu0 %235
      %v238 = vmul.f32 %v224, %v231
      %v239 = vmul.f32 %v225, %v231
      %v240 = vmul.f32 %v226, %v236
      %v241 = vmul.f32 %v227, %v236
      %243 = vset.pattern.permute.xlu0 0
      %244 = vperm.xlu0 %243, %v220
      %v245 = vpop.permute.xlu0 %244
      %248 = vset.pattern.permute.xlu0 0
      %249 = vperm.xlu0 %248, %v221
      %v250 = vpop.permute.xlu0 %249
      %v252 = vadd.f32 %v238, %v245
      %v253 = vadd.f32 %v239, %v245
      %v254 = vadd.f32 %v240, %v250
      %v255 = vadd.f32 %v241, %v250
      %v256 = vld [vmem:[%s212] sm:$0xff]
      %v257 = vld [vmem:[%s212 + $0x8] sm:$0xff]
      %v258 = vld [vmem:[%s212 + $0x10] sm:$0xff]
      %v259 = vld [vmem:[%s212 + $0x18] sm:$0xff]
      %v260 = vadd.f32 %v252, %v256
      %v261 = vadd.f32 %v253, %v257
      %v262 = vadd.f32 %v254, %v258
      %v263 = vadd.f32 %v255, %v259
      %v264 = vmax.f32 %v260, 0.0
      %v265 = vmax.f32 %v261, 0.0
      %v266 = vmax.f32 %v262, 0.0
      %v267 = vmax.f32 %v263, 0.0
      %268 = vst [vmem:[%s217] sm:$0xff] %v264
      %269 = vst [vmem:[%s217 + $0x8] sm:$0xff] %v265
      %270 = vst [vmem:[%s217 + $0x10] sm:$0xff] %v266
      %271 = vst [vmem:[%s217 + $0x18] sm:$0xff] %v267
      %p272 = scmp.lt.s32.totalorder %s15, 1
      %s273 = scalar_select %p272, %s15, 1
      %s274 = smul.addr %s273, 4
      %s275 = smul.addr %s274, 8
      %s276 = scalar_lea.vmem %s4, %s275
      // Predicated region
      $region37: #{basic_block.5} parent=35 // pred_check
        %p277 = pneg %p127
      $region38: #{basic_block.5} parent=35 // pred_check_branch
        %279 = sbr.rel (%p277) target = $region40
      $region39: #{basic_block.5} parent=35 // pred_region
        _
      $region40: #{basic_block.5} parent=35 // pred_fallthru
        _
    $region36: #{basic_block.5} parent=5 // pred_fallthru
      _
    %p280 = scmp.le.s32.totalorder 2, %s10
    // Predicated region
    $region41: #{basic_block.5} parent=5 // pred_check
      %p281 = pneg %p280
    $region42: #{basic_block.5} parent=5 // pred_check_branch
      %283 = sbr.rel (%p281) target = $region44
    $region43: #{basic_block.5} parent=5 // pred_region
      %s284 = ssub.s32 %s10, 2
      // Predicated region
      $region45: #{basic_block.5} parent=43 // pred_check
        %p285 = pneg %p133
      $region46: #{basic_block.5} parent=43 // pred_check_branch
        %287 = sbr.rel (%p285) target = $region48
      $region47: #{basic_block.5} parent=43 // pred_region
        %p288 = scmp.lt.s32.totalorder %s16, 1
        %s289 = scalar_select %p288, %s16, 1
        %s290 = smul.addr %s289, 4
        %s291 = smul.addr %s290, 8
        %s292 = scalar_lea.vmem %s4, %s291
      $region48: #{basic_block.5} parent=43 // pred_fallthru
        _
    $region44: #{basic_block.5} parent=5 // pred_fallthru
      _
  $region6: #{basic_block.5} parent=0 // loop_footer
    %s14 = sadd.s32 1, %s10
  $region7: #{basic_block.5} parent=0 // loop_footer_branch
    %9 = sbr.rel target = $region3
  $region8: #{basic_block.5} parent=0 // loop_exit
    _

// kernel: basic_block.3
$region0: #{basic_block.3}
  #allocation0 [shape = 'u32[]', space=smem, size = 0x4, offset = 0x4, fixed_abs, tag = 'smem constant byte address 0x4 - core index']
  #allocation1 [shape = 'u32[72,128]{1,0:T(1,128)}', space=vmem, size = 0x9000, scoped, tag = 'internal scratch']
  #allocation2 [shape = 'bf16[144,256]{1,0:T(8,128)(2,1)}', space=vmem, size = 0x12000, scoped, tag = 'scratch operand']
  %s0 = inlined_call_operand.vmem [shape: f32[2,16,256], index: 0, kind: input, shape index: {}]
  %s1 = inlined_call_operand.vmem [shape: bf16[16,144], index: 1, kind: input, shape index: {}]
  %s2 = inlined_call_operand.vmem [shape: f32[9,256], index: 2, kind: input, shape index: {}]
  %s3 = inlined_call_operand.vmem [shape: bf16[2,16,256], index: 3, kind: output, shape index: {0}]
  %s4 = inlined_call_operand.vmem [shape: f32[2,16,2], index: 4, kind: output, shape index: {1}]
  %5 = xla_tuple %s3, %s4
  %s6 = sld [smem:[#allocation0]]
  $region53: #{basic_block.3} parent=0
    _
  %s8 = ssub.s32 1, %s6
  %s9 = scalar_select 0, %s8, %s6
  loop: start=0, step=1, limit=4
  $region2: #{basic_block.3} parent=0 // loop_pre_header
    _
  $region3: #{basic_block.3} parent=0 // loop_header
    %s11 = sphi 0, %s15
    %p12 = scmp.ge.s32.totalorder %s11, 4
    %s21 = sphi 0, %s23
    %s24 = sphi 0, %s21
    %s25 = sphi 0, %s24
    %s41 = sphi 0, %s25
    %s45 = sphi 0, %s45
    %s47 = sphi 0, %s45
    %s48 = sphi 0, %s47
    %s62 = sphi 0, %s48
    %s66 = sphi 0, %s66
    %s68 = sphi 0, %s66
    %s69 = sphi 0, %s68
    %s83 = sphi 0, %s69
    %s89 = sphi 0, %s91
    %s92 = sphi 0, %s89
    %s93 = sphi 0, %s92
    %s109 = sphi 0, %s93
    %s115 = sphi 0, %s117
    %s118 = sphi 0, %s115
    %s119 = sphi 0, %s118
    %s135 = sphi 0, %s119
  $region4: #{basic_block.3} parent=0 // loop_header_branch
    %14 = sbr.rel (%p12) target = $region8
  $region5: #{basic_block.3} parent=0 // loop_body
    %s16 = ssub.s32 %s11, 1
    %s17 = ssub.s32 %s11, 2
    %s18 = sadd.s32 %s11, 1
    %s19 = ssub.s32 %s11, %s18
    %p20 = scmp.eq.s32.totalorder %s19, 0
    %s22 = sadd.s32 %s21, 1
    %s23 = scalar_select %p20, %s21, %s22
    %p26 = pneg %p20
    %p27 = scmp.eq.s32.totalorder %s11, 1
    %p28 = por %p26, %p27
    %p29 = scmp.ne.s32.totalorder %s21, %s24
    %p30 = scmp.eq.s32.totalorder %s11, 0
    %p31 = por %p29, %p30
    %p32 = scmp.ne.s32.totalorder %s21, %s24
    %p33 = scmp.eq.s32.totalorder %s16, 1
    %p34 = por %p32, %p33
    %p35 = scmp.ne.s32.totalorder %s24, %s25
    %p36 = scmp.eq.s32.totalorder %s16, 0
    %p37 = por %p35, %p36
    %p38 = scmp.ne.s32.totalorder %s24, %s25
    %p39 = scmp.eq.s32.totalorder %s17, 1
    %p40 = por %p38, %p39
    %p42 = scmp.ne.s32.totalorder %s25, %s41
    %p43 = scmp.eq.s32.totalorder %s17, 0
    %p44 = por %p42, %p43
    %s46 = sadd.s32 %s45, 1
    %p49 = scmp.eq.s32.totalorder %s11, 1
    %p50 = scmp.ne.s32.totalorder %s45, %s47
    %p51 = scmp.eq.s32.totalorder %s11, 0
    %p52 = por %p50, %p51
    %p53 = scmp.ne.s32.totalorder %s45, %s47
    %p54 = scmp.eq.s32.totalorder %s16, 1
    %p55 = por %p53, %p54
    %p56 = scmp.ne.s32.totalorder %s47, %s48
    %p57 = scmp.eq.s32.totalorder %s16, 0
    %p58 = por %p56, %p57
    %p59 = scmp.ne.s32.totalorder %s47, %s48
    %p60 = scmp.eq.s32.totalorder %s17, 1
    %p61 = por %p59, %p60
    %p63 = scmp.ne.s32.totalorder %s48, %s62
    %p64 = scmp.eq.s32.totalorder %s17, 0
    %p65 = por %p63, %p64
    %s67 = sadd.s32 %s66, 1
    %p70 = scmp.eq.s32.totalorder %s11, 1
    %p71 = scmp.ne.s32.totalorder %s66, %s68
    %p72 = scmp.eq.s32.totalorder %s11, 0
    %p73 = por %p71, %p72
    %p74 = scmp.ne.s32.totalorder %s66, %s68
    %p75 = scmp.eq.s32.totalorder %s16, 1
    %p76 = por %p74, %p75
    %p77 = scmp.ne.s32.totalorder %s68, %s69
    %p78 = scmp.eq.s32.totalorder %s16, 0
    %p79 = por %p77, %p78
    %p80 = scmp.ne.s32.totalorder %s68, %s69
    %p81 = scmp.eq.s32.totalorder %s17, 1
    %p82 = por %p80, %p81
    %p84 = scmp.ne.s32.totalorder %s69, %s83
    %p85 = scmp.eq.s32.totalorder %s17, 0
    %p86 = por %p84, %p85
    %s87 = ssub.s32 %s11, %s18
    %p88 = scmp.eq.s32.totalorder %s87, 0
    %s90 = sadd.s32 %s89, 1
    %s91 = scalar_select %p88, %s89, %s90
    %p94 = pneg %p88
    %p95 = scmp.eq.s32.totalorder %s11, 1
    %p96 = por %p94, %p95
    %p97 = scmp.ne.s32.totalorder %s89, %s92
    %p98 = scmp.eq.s32.totalorder %s11, 0
    %p99 = por %p97, %p98
    %p100 = scmp.ne.s32.totalorder %s89, %s92
    %p101 = scmp.eq.s32.totalorder %s16, 1
    %p102 = por %p100, %p101
    %p103 = scmp.ne.s32.totalorder %s92, %s93
    %p104 = scmp.eq.s32.totalorder %s16, 0
    %p105 = por %p103, %p104
    %p106 = scmp.ne.s32.totalorder %s92, %s93
    %p107 = scmp.eq.s32.totalorder %s17, 1
    %p108 = por %p106, %p107
    %p110 = scmp.ne.s32.totalorder %s93, %s109
    %p111 = scmp.eq.s32.totalorder %s17, 0
    %p112 = por %p110, %p111
    %s113 = ssub.s32 %s11, %s18
    %p114 = scmp.eq.s32.totalorder %s113, 0
    %s116 = sadd.s32 %s115, 1
    %s117 = scalar_select %p114, %s115, %s116
    %p120 = pneg %p114
    %p121 = scmp.eq.s32.totalorder %s11, 1
    %p122 = por %p120, %p121
    %p123 = scmp.ne.s32.totalorder %s115, %s118
    %p124 = scmp.eq.s32.totalorder %s11, 0
    %p125 = por %p123, %p124
    %p126 = scmp.ne.s32.totalorder %s115, %s118
    %p127 = scmp.eq.s32.totalorder %s16, 1
    %p128 = por %p126, %p127
    %p129 = scmp.ne.s32.totalorder %s118, %s119
    %p130 = scmp.eq.s32.totalorder %s16, 0
    %p131 = por %p129, %p130
    %p132 = scmp.ne.s32.totalorder %s118, %s119
    %p133 = scmp.eq.s32.totalorder %s17, 1
    %p134 = por %p132, %p133
    %p136 = scmp.ne.s32.totalorder %s119, %s135
    %p137 = scmp.eq.s32.totalorder %s17, 0
    %p138 = por %p136, %p137
    %p139 = scmp.le.s32.totalorder 1, %s11
    %p140 = scmp.lt.s32.totalorder %s11, 3
    %p141 = pnand %p139, %p140
    %p142 = pneg %p141
    // Predicated region
    $region9: #{basic_block.3} parent=5 // pred_check
      _
    $region10: #{basic_block.3} parent=5 // pred_check_branch
      %144 = sbr.rel (%p141) target = $region12
    $region11: #{basic_block.3} parent=5 // pred_region
      %s145 = ssub.s32 %s11, 1
      // Predicated region
      $region13: #{basic_block.3} parent=11 // pred_check
        %p146 = pneg %p58
      $region14: #{basic_block.3} parent=11 // pred_check_branch
        %148 = sbr.rel (%p146) target = $region16
      $region15: #{basic_block.3} parent=11 // pred_region
        _
      $region16: #{basic_block.3} parent=11 // pred_fallthru
        _
      // Predicated region
      $region17: #{basic_block.3} parent=11 // pred_check
        %p149 = pneg %p79
      $region18: #{basic_block.3} parent=11 // pred_check_branch
        %151 = sbr.rel (%p149) target = $region20
      $region19: #{basic_block.3} parent=11 // pred_region
        _
      $region20: #{basic_block.3} parent=11 // pred_fallthru
        _
    $region12: #{basic_block.3} parent=5 // pred_fallthru
      _
    %p152 = scmp.lt.s32.totalorder %s11, 2
    // Predicated region
    $region21: #{basic_block.3} parent=5 // pred_check
      %p153 = pneg %p152
    $region22: #{basic_block.3} parent=5 // pred_check_branch
      %155 = sbr.rel (%p153) target = $region24
    $region23: #{basic_block.3} parent=5 // pred_region
      // Predicated region
      $region25: #{basic_block.3} parent=23 // pred_check
        %p156 = pneg %p31
      $region26: #{basic_block.3} parent=23 // pred_check_branch
        %158 = sbr.rel (%p156) target = $region28
      $region27: #{basic_block.3} parent=23 // pred_region
        %p159 = scmp.lt.s32.totalorder %s11, 1
        %s160 = scalar_select %p159, %s11, 1
        %s161 = smul.addr %s160, 4
        %s162 = smul.addr %s161, 8
        %s163 = scalar_lea.vmem %s0, %s162
      $region28: #{basic_block.3} parent=23 // pred_fallthru
        _
    $region24: #{basic_block.3} parent=5 // pred_fallthru
      _
    %p164 = scmp.le.s32.totalorder 1, %s11
    %p165 = scmp.lt.s32.totalorder %s11, 3
    %p166 = pnand %p164, %p165
    %p167 = pneg %p166
    // Predicated region
    $region29: #{basic_block.3} parent=5 // pred_check
      _
    $region30: #{basic_block.3} parent=5 // pred_check_branch
      %169 = sbr.rel (%p166) target = $region32
    $region31: #{basic_block.3} parent=5 // pred_region
      %s170 = ssub.s32 %s11, 1
      %p171 = scmp.lt.s32.totalorder %s16, 1
      %s172 = scalar_select %p171, %s16, 1
      %s173 = smul.addr %s172, 4
      %s174 = smul.addr %s173, 8
      %s175 = scalar_lea.vmem %s0, %s174
      %p176 = pneg %p37
      %p177 = pneg %p34
      %p178 = pneg %p58
      %p179 = pneg %p55
      %p180 = pneg %p79
      %p181 = pneg %p76
      %p182 = pneg %p105
      %p183 = pneg %p102
      %p184 = scmp.lt.s32.totalorder %s16, 1
      %s185 = scalar_select %p184, %s16, 1
      %s186 = smul.addr %s185, 4
      %s187 = smul.addr %s186, 4
      %s188 = scalar_lea.vmem %s3, %s187
      %p189 = pneg %p131
      %p190 = pneg %p128
      %p191 = scmp.lt.s32.totalorder %s16, 1
      %s192 = scalar_select %p191, %s16, 1
      %s193 = smul.addr %s192, 2
      %s194 = smul.addr %s193, 8
      %s195 = scalar_lea.vmem %s4, %s194
      %p196 = scmp.lt.s32.totalorder %s16, 1
      %s197 = scalar_select %p196, %s16, 1
      %s198 = smul.addr %s197, 4
      %s199 = smul.addr %s198, 8
      %s200 = scalar_lea.vmem %s0, %s199
      %p201 = scmp.lt.s32.totalorder %s16, 1
      %s202 = scalar_select %p201, %s16, 1
      %s203 = smul.addr %s202, 4
      %s204 = smul.addr %s203, 4
      %s205 = scalar_lea.vmem %s3, %s204
      %p206 = scmp.lt.s32.totalorder %s16, 1
      %s207 = scalar_select %p206, %s16, 1
      %s208 = smul.addr %s207, 2
      %s209 = smul.addr %s208, 8
      %s210 = scalar_lea.vmem %s4, %s209
      %v212 = vld [vmem:[%s200] sm:$0xff]
      %v213 = vld [vmem:[%s200 + $0x8] sm:$0xff]
      %v214 = vld [vmem:[%s200 + $0x10] sm:$0xff]
      %v215 = vld [vmem:[%s200 + $0x18] sm:$0xff]
      %216 = vrot.lane.b32.xlu0 %v212, 17
      %v217 = vpop.permute.xlu0 %216
      %218 = vrot.lane.b32.xlu0 %v214, 17
      %v219 = vpop.permute.xlu0 %218
      %220 = vrot.lane.b32.xlu0 %v213, 17
      %v221 = vpop.permute.xlu0 %220
      %222 = vrot.lane.b32.xlu0 %v215, 17
      %v223 = vpop.permute.xlu0 %222
      %v224 = vlaneseq
      %v225 = vand.u32 %v224, 127
      %vm226 = vcmp.lt.s32.totalorder %v225, 17
      %v227 = vsel %vm226, %v217, %v221
      %v228 = vsel %vm226, %v219, %v223
      %v229 = vsel %vm226, %v221, %v217
      %v230 = vsel %vm226, %v223, %v219
      %v231 = vld [vmem:[%s2] ss:$8 sm:$0x3]
      %v233 = vperm.slane %v231, 0
      %v234 = vperm.slane %v231, 1
      %v237 = vmul.f32 %v229, %v233
      %v238 = vmul.f32 %v227, %v234
      %v239 = vmul.f32 %v230, %v233
      %v240 = vmul.f32 %v228, %v234
      %v241 = vpack.c.bf16 %v238, %v237
      %v242 = vpack.c.bf16 %v240, %v239
      %243 = vst [vmem:[#allocation2] sm:$0xff] %v241
      %244 = vst [vmem:[#allocation2 + $0x8] sm:$0xff] %v242
      %245 = vrot.lane.b32.xlu0 %v212, 16
      %v246 = vpop.permute.xlu0 %245
      %247 = vrot.lane.b32.xlu0 %v214, 16
      %v248 = vpop.permute.xlu0 %247
      %249 = vrot.lane.b32.xlu0 %v213, 16
      %v250 = vpop.permute.xlu0 %249
      %251 = vrot.lane.b32.xlu0 %v215, 16
      %v252 = vpop.permute.xlu0 %251
      %vm253 = vcmp.lt.s32.totalorder %v225, 16
      %v254 = vsel %vm253, %v246, %v250
      %v255 = vsel %vm253, %v248, %v252
      %v256 = vsel %vm253, %v250, %v246
      %v257 = vsel %vm253, %v252, %v248
      %s258 = scalar_lea.vmem %s2, 1
      %v259 = vld [vmem:[%s258] ss:$8 sm:$0x3]
      %v261 = vperm.slane %v259, 0
      %v262 = vperm.slane %v259, 1
      %v265 = vmul.f32 %v256, %v261
      %v266 = vmul.f32 %v254, %v262
      %v267 = vmul.f32 %v257, %v261
      %v268 = vmul.f32 %v255, %v262
      %v269 = vpack.c.bf16 %v266, %v265
      %v270 = vpack.c.bf16 %v268, %v267
      %271 = vst [vmem:[#allocation2 + $0x10] sm:$0xff] %v269
      %272 = vst [vmem:[#allocation2 + $0x18] sm:$0xff] %v270
      %273 = vrot.lane.b32.xlu0 %v212, 15
      %v274 = vpop.permute.xlu0 %273
      %275 = vrot.lane.b32.xlu0 %v214, 15
      %v276 = vpop.permute.xlu0 %275
      %277 = vrot.lane.b32.xlu0 %v213, 15
      %v278 = vpop.permute.xlu0 %277
      %279 = vrot.lane.b32.xlu0 %v215, 15
      %v280 = vpop.permute.xlu0 %279
      %vm281 = vcmp.lt.s32.totalorder %v225, 15
      %v282 = vsel %vm281, %v274, %v278
      %v283 = vsel %vm281, %v276, %v280
      %v284 = vsel %vm281, %v278, %v274
      %v285 = vsel %vm281, %v280, %v276
      %s286 = scalar_lea.vmem %s2, 2
      %v287 = vld [vmem:[%s286] ss:$8 sm:$0x3]
      %v289 = vperm.slane %v287, 0
      %v290 = vperm.slane %v287, 1
      %v293 = vmul.f32 %v284, %v289
      %v294 = vmul.f32 %v282, %v290
      %v295 = vmul.f32 %v285, %v289
      %v296 = vmul.f32 %v283, %v290
      %v297 = vpack.c.bf16 %v294, %v293
      %v298 = vpack.c.bf16 %v296, %v295
      %299 = vst [vmem:[#allocation2 + $0x20] sm:$0xff] %v297
      %300 = vst [vmem:[#allocation2 + $0x28] sm:$0xff] %v298
      %301 = vrot.lane.b32.xlu0 %v212, 1
      %v302 = vpop.permute.xlu0 %301
      %303 = vrot.lane.b32.xlu0 %v214, 1
      %v304 = vpop.permute.xlu0 %303
      %305 = vrot.lane.b32.xlu0 %v213, 1
      %v306 = vpop.permute.xlu0 %305
      %307 = vrot.lane.b32.xlu0 %v215, 1
      %v308 = vpop.permute.xlu0 %307
      %vm309 = vcmp.lt.s32.totalorder %v225, 1
      %v310 = vsel %vm309, %v302, %v306
      %v311 = vsel %vm309, %v304, %v308
      %v312 = vsel %vm309, %v306, %v302
      %v313 = vsel %vm309, %v308, %v304
      %s314 = scalar_lea.vmem %s2, 3
      %v315 = vld [vmem:[%s314] ss:$8 sm:$0x3]
      %v317 = vperm.slane %v315, 0
      %v318 = vperm.slane %v315, 1
      %v321 = vmul.f32 %v312, %v317
      %v322 = vmul.f32 %v310, %v318
      %v323 = vmul.f32 %v313, %v317
      %v324 = vmul.f32 %v311, %v318
      %v325 = vpack.c.bf16 %v322, %v321
      %v326 = vpack.c.bf16 %v324, %v323
      %327 = vst [vmem:[#allocation2 + $0x30] sm:$0xff] %v325
      %328 = vst [vmem:[#allocation2 + $0x38] sm:$0xff] %v326
      %v329 = vpack.c.bf16 %v213, %v212
      %v330 = vpack.c.bf16 %v215, %v214
      %331 = vst [vmem:[#allocation2 + $0x40] sm:$0xff] %v329
      %332 = vst [vmem:[#allocation2 + $0x48] sm:$0xff] %v330
      %333 = vrot.lane.b32.xlu0 %v212, 127
      %v334 = vpop.permute.xlu0 %333
      %335 = vrot.lane.b32.xlu0 %v214, 127
      %v336 = vpop.permute.xlu0 %335
      %337 = vrot.lane.b32.xlu0 %v213, 127
      %v338 = vpop.permute.xlu0 %337
      %339 = vrot.lane.b32.xlu0 %v215, 127
      %v340 = vpop.permute.xlu0 %339
      %vm341 = vcmp.lt.s32.totalorder %v225, 127
      %v342 = vsel %vm341, %v334, %v338
      %v343 = vsel %vm341, %v336, %v340
      %v344 = vsel %vm341, %v338, %v334
      %v345 = vsel %vm341, %v340, %v336
      %s346 = scalar_lea.vmem %s2, 5
      %v347 = vld [vmem:[%s346] ss:$8 sm:$0x3]
      %v349 = vperm.slane %v347, 0
      %v350 = vperm.slane %v347, 1
      %v353 = vmul.f32 %v342, %v349
      %v354 = vmul.f32 %v344, %v350
      %v355 = vmul.f32 %v343, %v349
      %v356 = vmul.f32 %v345, %v350
      %v357 = vpack.c.bf16 %v354, %v353
      %v358 = vpack.c.bf16 %v356, %v355
      %359 = vst [vmem:[#allocation2 + $0x50] sm:$0xff] %v357
      %360 = vst [vmem:[#allocation2 + $0x58] sm:$0xff] %v358
      %361 = vrot.lane.b32.xlu0 %v212, 113
      %v362 = vpop.permute.xlu0 %361
      %363 = vrot.lane.b32.xlu0 %v214, 113
      %v364 = vpop.permute.xlu0 %363
      %365 = vrot.lane.b32.xlu0 %v213, 113
      %v366 = vpop.permute.xlu0 %365
      %367 = vrot.lane.b32.xlu0 %v215, 113
      %v368 = vpop.permute.xlu0 %367
      %vm369 = vcmp.lt.s32.totalorder %v225, 113
      %v370 = vsel %vm369, %v362, %v366
      %v371 = vsel %vm369, %v364, %v368
      %v372 = vsel %vm369, %v366, %v362
      %v373 = vsel %vm369, %v368, %v364
      %s374 = scalar_lea.vmem %s2, 6
      %v375 = vld [vmem:[%s374] ss:$8 sm:$0x3]
      %v377 = vperm.slane %v375, 0
      %v378 = vperm.slane %v375, 1
      %v381 = vmul.f32 %v370, %v377
      %v382 = vmul.f32 %v372, %v378
      %v383 = vmul.f32 %v371, %v377
      %v384 = vmul.f32 %v373, %v378
      %v385 = vpack.c.bf16 %v382, %v381
      %v386 = vpack.c.bf16 %v384, %v383
      %387 = vst [vmem:[#allocation2 + $0x60] sm:$0xff] %v385
      %388 = vst [vmem:[#allocation2 + $0x68] sm:$0xff] %v386
      %389 = vrot.lane.b32.xlu0 %v212, 112
      %v390 = vpop.permute.xlu0 %389
      %391 = vrot.lane.b32.xlu0 %v214, 112
      %v392 = vpop.permute.xlu0 %391
      %393 = vrot.lane.b32.xlu0 %v213, 112
      %v394 = vpop.permute.xlu0 %393
      %395 = vrot.lane.b32.xlu0 %v215, 112
      %v396 = vpop.permute.xlu0 %395
      %vm397 = vcmp.lt.s32.totalorder %v225, 112
      %v398 = vsel %vm397, %v390, %v394
      %v399 = vsel %vm397, %v392, %v396
      %v400 = vsel %vm397, %v394, %v390
      %v401 = vsel %vm397, %v396, %v392
      %s402 = scalar_lea.vmem %s2, 7
      %v403 = vld [vmem:[%s402] ss:$8 sm:$0x3]
      %v405 = vperm.slane %v403, 0
      %v406 = vperm.slane %v403, 1
      %v409 = vmul.f32 %v398, %v405
      %v410 = vmul.f32 %v400, %v406
      %v411 = vmul.f32 %v399, %v405
      %v412 = vmul.f32 %v401, %v406
      %v413 = vpack.c.bf16 %v410, %v409
      %v414 = vpack.c.bf16 %v412, %v411
      %415 = vst [vmem:[#allocation2 + $0x70] sm:$0xff] %v413
      %416 = vst [vmem:[#allocation2 + $0x78] sm:$0xff] %v414
      %417 = vrot.lane.b32.xlu0 %v212, 111
      %v418 = vpop.permute.xlu0 %417
      %419 = vrot.lane.b32.xlu0 %v214, 111
      %v420 = vpop.permute.xlu0 %419
      %421 = vrot.lane.b32.xlu0 %v213, 111
      %v422 = vpop.permute.xlu0 %421
      %423 = vrot.lane.b32.xlu0 %v215, 111
      %v424 = vpop.permute.xlu0 %423
      %vm425 = vcmp.lt.s32.totalorder %v225, 111
      %v426 = vsel %vm425, %v418, %v422
      %v427 = vsel %vm425, %v420, %v424
      %v428 = vsel %vm425, %v422, %v418
      %v429 = vsel %vm425, %v424, %v420
      %s430 = scalar_lea.vmem %s2, 16
      %v431 = vld [vmem:[%s430] ss:$8 sm:$0x3]
      %v433 = vperm.slane %v431, 0
      %v434 = vperm.slane %v431, 1
      %v437 = vmul.f32 %v426, %v433
      %v438 = vmul.f32 %v428, %v434
      %v439 = vmul.f32 %v427, %v433
      %v440 = vmul.f32 %v429, %v434
      %v441 = vpack.c.bf16 %v438, %v437
      %v442 = vpack.c.bf16 %v440, %v439
      %443 = vst [vmem:[#allocation2 + $0x80] sm:$0xff] %v441
      %444 = vst [vmem:[#allocation2 + $0x88] sm:$0xff] %v442
      %v445 = vld [vmem:[%s1] sm:$0xff]
      %v446 = vld [vmem:[%s1 + $0x8] sm:$0xff]
      %v447 = vld [vmem:[#allocation2] sm:$0xff]
      %v448 = vld [vmem:[#allocation2 + $0x8] sm:$0xff]
      %v449 = vld [vmem:[#allocation2 + $0x10] sm:$0xff]
      %v450 = vld [vmem:[#allocation2 + $0x18] sm:$0xff]
      %v451 = vld [vmem:[#allocation2 + $0x20] sm:$0xff]
      %v452 = vld [vmem:[#allocation2 + $0x28] sm:$0xff]
      %v453 = vld [vmem:[#allocation2 + $0x30] sm:$0xff]
      %v454 = vld [vmem:[#allocation2 + $0x38] sm:$0xff]
      %v455 = vld [vmem:[#allocation2 + $0x40] sm:$0xff]
      %v456 = vld [vmem:[#allocation2 + $0x48] sm:$0xff]
      %v457 = vld [vmem:[#allocation2 + $0x50] sm:$0xff]
      %v458 = vld [vmem:[#allocation2 + $0x58] sm:$0xff]
      %v459 = vld [vmem:[#allocation2 + $0x60] sm:$0xff]
      %v460 = vld [vmem:[#allocation2 + $0x68] sm:$0xff]
      %v461 = vld [vmem:[#allocation2 + $0x70] sm:$0xff]
      %v462 = vld [vmem:[#allocation2 + $0x78] sm:$0xff]
      %v463 = vld [vmem:[#allocation2 + $0x80] sm:$0xff]
      %v464 = vld [vmem:[#allocation2 + $0x88] sm:$0xff]
      %v467 = vunpack.c.l.b16 %v445
      %v468 = vunpack.c.h.b16 %v445
      %v469 = vunpack.c.l.b16 %v446
      %v470 = vunpack.c.h.b16 %v446
      %v471 = vpack.c.b16 %v469, %v467
      %v472 = vpack.c.b16 %v470, %v468
      %v492 = vunpack.c.l.b16 %v447
      %v493 = vunpack.c.h.b16 %v447
      %v494 = vunpack.c.l.b16 %v448
      %v495 = vunpack.c.h.b16 %v448
      %v496 = vunpack.c.l.b16 %v449
      %v497 = vunpack.c.h.b16 %v449
      %v498 = vunpack.c.l.b16 %v450
      %v499 = vunpack.c.h.b16 %v450
      %v500 = vunpack.c.l.b16 %v451
      %v501 = vunpack.c.h.b16 %v451
      %v502 = vunpack.c.l.b16 %v452
      %v503 = vunpack.c.h.b16 %v452
      %v504 = vunpack.c.l.b16 %v453
      %v505 = vunpack.c.h.b16 %v453
      %v506 = vunpack.c.l.b16 %v454
      %v507 = vunpack.c.h.b16 %v454
      %v508 = vunpack.c.l.b16 %v455
      %v509 = vunpack.c.h.b16 %v455
      %v510 = vunpack.c.l.b16 %v456
      %v511 = vunpack.c.h.b16 %v456
      %v512 = vunpack.c.l.b16 %v457
      %v513 = vunpack.c.h.b16 %v457
      %v514 = vunpack.c.l.b16 %v458
      %v515 = vunpack.c.h.b16 %v458
      %v516 = vunpack.c.l.b16 %v459
      %v517 = vunpack.c.h.b16 %v459
      %v518 = vunpack.c.l.b16 %v460
      %v519 = vunpack.c.h.b16 %v460
      %v520 = vunpack.c.l.b16 %v461
      %v521 = vunpack.c.h.b16 %v461
      %v522 = vunpack.c.l.b16 %v462
      %v523 = vunpack.c.h.b16 %v462
      %v524 = vunpack.c.l.b16 %v463
      %v525 = vunpack.c.h.b16 %v463
      %v526 = vunpack.c.l.b16 %v464
      %v527 = vunpack.c.h.b16 %v464
      %v528 = vpack.c.b16 %v494, %v492
      %v529 = vpack.c.b16 %v495, %v493
      %v530 = vpack.c.b16 %v498, %v496
      %v531 = vpack.c.b16 %v499, %v497
      %v532 = vpack.c.b16 %v502, %v500
      %v533 = vpack.c.b16 %v503, %v501
      %v534 = vpack.c.b16 %v506, %v504
      %v535 = vpack.c.b16 %v507, %v505
      %v536 = vpack.c.b16 %v510, %v508
      %v537 = vpack.c.b16 %v511, %v509
      %v538 = vpack.c.b16 %v514, %v512
      %v539 = vpack.c.b16 %v515, %v513
      %v540 = vpack.c.b16 %v518, %v516
      %v541 = vpack.c.b16 %v519, %v517
      %v542 = vpack.c.b16 %v522, %v520
      %v543 = vpack.c.b16 %v523, %v521
      %v544 = vpack.c.b16 %v526, %v524
      %v545 = vpack.c.b16 %v527, %v525
      %vm564 = vcmask 130048
      %v566 = vsel %vm564, %v472, 0
      %568 = vmatpush.bf16.msra.mxu0 %v542
      %569 = vmatpush.bf16.msra.mxu0 %v540
      %570 = vmatpush.bf16.msra.mxu0 %v538
      %571 = vmatpush.bf16.msra.mxu0 %v536
      %572 = vmatpush.bf16.msra.mxu0 %v534
      %573 = vmatpush.bf16.msra.mxu0 %v532
      %574 = vmatpush.bf16.msra.mxu0 %v530
      %575 = vmatpush.bf16.msra.mxu0 %v528
      %576 = vmatmul.bf16.gmra.mxu0 %v471
      %v577 = vpop.f32.mrf.mxu0
      %v578 = vadd.f32 0.0, %v577
      %v579 = vpop.f32.mrf.mxu0
      %v580 = vadd.f32 0.0, %v579
      %581 = vdwg.mxu0
      %582 = vmatpush.bf16.msra.mxu0 0
      %583 = vmatpush.bf16.msra.mxu0 0
      %584 = vmatpush.bf16.msra.mxu0 0
      %585 = vmatpush.bf16.msra.mxu0 0
      %586 = vmatpush.bf16.msra.mxu0 0
      %587 = vmatpush.bf16.msra.mxu0 0
      %588 = vmatpush.bf16.msra.mxu0 0
      %589 = vmatpush.bf16.msra.mxu0 %v544
      %590 = vmatmul.bf16.gmra.mxu0 %v566
      %v591 = vpop.f32.mrf.mxu0
      %v592 = vadd.f32 %v578, %v591
      %v593 = vpop.f32.mrf.mxu0
      %v594 = vadd.f32 %v580, %v593
      %595 = vdwg.mxu0
      %596 = vmatpush.bf16.msra.mxu0 %v543
      %597 = vmatpush.bf16.msra.mxu0 %v541
      %598 = vmatpush.bf16.msra.mxu0 %v539
      %599 = vmatpush.bf16.msra.mxu0 %v537
      %600 = vmatpush.bf16.msra.mxu0 %v535
      %601 = vmatpush.bf16.msra.mxu0 %v533
      %602 = vmatpush.bf16.msra.mxu0 %v531
      %603 = vmatpush.bf16.msra.mxu0 %v529
      %604 = vmatmul.bf16.gmra.mxu0 %v471
      %v605 = vpop.f32.mrf.mxu0
      %v606 = vadd.f32 0.0, %v605
      %v607 = vpop.f32.mrf.mxu0
      %v608 = vadd.f32 0.0, %v607
      %609 = vdwg.mxu0
      %610 = vmatpush.bf16.msra.mxu0 0
      %611 = vmatpush.bf16.msra.mxu0 0
      %612 = vmatpush.bf16.msra.mxu0 0
      %613 = vmatpush.bf16.msra.mxu0 0
      %614 = vmatpush.bf16.msra.mxu0 0
      %615 = vmatpush.bf16.msra.mxu0 0
      %616 = vmatpush.bf16.msra.mxu0 0
      %617 = vmatpush.bf16.msra.mxu0 %v545
      %618 = vmatmul.bf16.gmra.mxu0 %v566
      %v619 = vpop.f32.mrf.mxu0
      %v620 = vadd.f32 %v606, %v619
      %v621 = vpop.f32.mrf.mxu0
      %v622 = vadd.f32 %v608, %v621
      %623 = vdwg.mxu0
      %v624 = vpack.c.bf16 %v620, %v592
      %v625 = vpack.c.bf16 %v622, %v594
      %626 = vst [vmem:[%s205] sm:$0xff] %v624
      %627 = vst [vmem:[%s205 + $0x8] sm:$0xff] %v625
      %v628 = vadd.f32 %v592, %v620
      %629 = vadd.xlane.f32.xlu0 %v628
      %v630 = vpop.xlane.xlu0 %629
      %v631 = vadd.f32 %v594, %v622
      %632 = vadd.xlane.f32.xlu0 %v631
      %v633 = vpop.xlane.xlu0 %632
      %v634 = vmul.f32 %v592, %v592
      %v635 = vmul.f32 %v620, %v620
      %v636 = vmul.f32 %v594, %v594
      %v637 = vmul.f32 %v622, %v622
      %v638 = vadd.f32 %v634, %v635
      %639 = vadd.xlane.f32.xlu0 %v638
      %v640 = vpop.xlane.xlu0 %639
      %v641 = vadd.f32 %v636, %v637
      %642 = vadd.xlane.f32.xlu0 %v641
      %v643 = vpop.xlane.xlu0 %642
      %vm644 = vcmask 7168
      %v645 = vsel %vm644, %v630, %v640
      %v646 = vsel %vm644, %v633, %v643
      %vm647 = vcmask 15360
      %648 = vst.msk [vmem:[%s210] sm:$0xff] %vm647, %v645
      %649 = vst.msk [vmem:[%s210 + $0x8] sm:$0xff] %vm647, %v646
      %p650 = scmp.lt.s32.totalorder %s16, 1
      %s651 = scalar_select %p650, %s16, 1
      %s652 = smul.addr %s651, 4
      %s653 = smul.addr %s652, 4
      %s654 = scalar_lea.vmem %s3, %s653
      %p655 = scmp.lt.s32.totalorder %s16, 1
      %s656 = scalar_select %p655, %s16, 1
      %s657 = smul.addr %s656, 2
      %s658 = smul.addr %s657, 8
      %s659 = scalar_lea.vmem %s4, %s658
      // Predicated region
      $region33: #{basic_block.3} parent=31 // pred_check
        %p660 = pneg %p102
      $region34: #{basic_block.3} parent=31 // pred_check_branch
        %662 = sbr.rel (%p660) target = $region36
      $region35: #{basic_block.3} parent=31 // pred_region
        _
      $region36: #{basic_block.3} parent=31 // pred_fallthru
        _
      // Predicated region
      $region37: #{basic_block.3} parent=31 // pred_check
        %p663 = pneg %p128
      $region38: #{basic_block.3} parent=31 // pred_check_branch
        %665 = sbr.rel (%p663) target = $region40
      $region39: #{basic_block.3} parent=31 // pred_region
        _
      $region40: #{basic_block.3} parent=31 // pred_fallthru
        _
    $region32: #{basic_block.3} parent=5 // pred_fallthru
      _
    %p666 = scmp.le.s32.totalorder 2, %s11
    // Predicated region
    $region41: #{basic_block.3} parent=5 // pred_check
      %p667 = pneg %p666
    $region42: #{basic_block.3} parent=5 // pred_check_branch
      %669 = sbr.rel (%p667) target = $region44
    $region43: #{basic_block.3} parent=5 // pred_region
      %s670 = ssub.s32 %s11, 2
      // Predicated region
      $region45: #{basic_block.3} parent=43 // pred_check
        %p671 = pneg %p108
      $region46: #{basic_block.3} parent=43 // pred_check_branch
        %673 = sbr.rel (%p671) target = $region48
      $region47: #{basic_block.3} parent=43 // pred_region
        %p674 = scmp.lt.s32.totalorder %s17, 1
        %s675 = scalar_select %p674, %s17, 1
        %s676 = smul.addr %s675, 4
        %s677 = smul.addr %s676, 4
        %s678 = scalar_lea.vmem %s3, %s677
      $region48: #{basic_block.3} parent=43 // pred_fallthru
        _
      // Predicated region
      $region49: #{basic_block.3} parent=43 // pred_check
        %p679 = pneg %p134
      $region50: #{basic_block.3} parent=43 // pred_check_branch
        %681 = sbr.rel (%p679) target = $region52
      $region51: #{basic_block.3} parent=43 // pred_region
        %p682 = scmp.lt.s32.totalorder %s17, 1
        %s683 = scalar_select %p682, %s17, 1
        %s684 = smul.addr %s683, 2
        %s685 = smul.addr %s684, 8
        %s686 = scalar_lea.vmem %s4, %s685
      $region52: #{basic_block.3} parent=43 // pred_fallthru
        _
    $region44: #{basic_block.3} parent=5 // pred_fallthru
      _
  $region6: #{basic_block.3} parent=0 // loop_footer
    %s15 = sadd.s32 1, %s11
  $region7: #{basic_block.3} parent=0 // loop_footer_branch
    %10 = sbr.rel target = $region3
  $region8: #{basic_block.3} parent=0 // loop_exit
    _

// kernel: basic_block.4
$region0: #{basic_block.4}
  #allocation0 [shape = 'u32[]', space=smem, size = 0x4, offset = 0x4, fixed_abs, tag = 'smem constant byte address 0x4 - core index']
  #allocation1 [shape = 'u32[72,128]{1,0:T(1,128)}', space=vmem, size = 0x9000, scoped, tag = 'internal scratch']
  #allocation2 [shape = 'bf16[144,256]{1,0:T(8,128)(2,1)}', space=vmem, size = 0x12000, scoped, tag = 'scratch operand']
  %s0 = inlined_call_operand.vmem [shape: bf16[2,16,256], index: 0, kind: input, shape index: {}]
  %s1 = inlined_call_operand.vmem [shape: f32[16,1], index: 1, kind: input, shape index: {}]
  %s2 = inlined_call_operand.vmem [shape: f32[16,1], index: 2, kind: input, shape index: {}]
  %s3 = inlined_call_operand.vmem [shape: bf16[16,144], index: 3, kind: input, shape index: {}]
  %s4 = inlined_call_operand.vmem [shape: f32[9,256], index: 4, kind: input, shape index: {}]
  %s5 = inlined_call_operand.vmem [shape: bf16[2,16,256], index: 5, kind: output, shape index: {0}]
  %s6 = inlined_call_operand.vmem [shape: f32[2,16,2], index: 6, kind: output, shape index: {1}]
  %7 = xla_tuple %s5, %s6
  %s8 = sld [smem:[#allocation0]]
  $region61: #{basic_block.4} parent=0
    _
  %s10 = ssub.s32 1, %s8
  %s11 = scalar_select 0, %s10, %s8
  loop: start=0, step=1, limit=4
  $region2: #{basic_block.4} parent=0 // loop_pre_header
    _
  $region3: #{basic_block.4} parent=0 // loop_header
    %s13 = sphi 0, %s17
    %p14 = scmp.ge.s32.totalorder %s13, 4
    %s23 = sphi 0, %s25
    %s26 = sphi 0, %s23
    %s27 = sphi 0, %s26
    %s43 = sphi 0, %s27
    %s47 = sphi 0, %s47
    %s49 = sphi 0, %s47
    %s50 = sphi 0, %s49
    %s64 = sphi 0, %s50
    %s68 = sphi 0, %s68
    %s70 = sphi 0, %s68
    %s71 = sphi 0, %s70
    %s85 = sphi 0, %s71
    %s89 = sphi 0, %s89
    %s91 = sphi 0, %s89
    %s92 = sphi 0, %s91
    %s106 = sphi 0, %s92
    %s110 = sphi 0, %s110
    %s112 = sphi 0, %s110
    %s113 = sphi 0, %s112
    %s127 = sphi 0, %s113
    %s133 = sphi 0, %s135
    %s136 = sphi 0, %s133
    %s137 = sphi 0, %s136
    %s153 = sphi 0, %s137
    %s159 = sphi 0, %s161
    %s162 = sphi 0, %s159
    %s163 = sphi 0, %s162
    %s179 = sphi 0, %s163
  $region4: #{basic_block.4} parent=0 // loop_header_branch
    %16 = sbr.rel (%p14) target = $region8
  $region5: #{basic_block.4} parent=0 // loop_body
    %s18 = ssub.s32 %s13, 1
    %s19 = ssub.s32 %s13, 2
    %s20 = sadd.s32 %s13, 1
    %s21 = ssub.s32 %s13, %s20
    %p22 = scmp.eq.s32.totalorder %s21, 0
    %s24 = sadd.s32 %s23, 1
    %s25 = scalar_select %p22, %s23, %s24
    %p28 = pneg %p22
    %p29 = scmp.eq.s32.totalorder %s13, 1
    %p30 = por %p28, %p29
    %p31 = scmp.ne.s32.totalorder %s23, %s26
    %p32 = scmp.eq.s32.totalorder %s13, 0
    %p33 = por %p31, %p32
    %p34 = scmp.ne.s32.totalorder %s23, %s26
    %p35 = scmp.eq.s32.totalorder %s18, 1
    %p36 = por %p34, %p35
    %p37 = scmp.ne.s32.totalorder %s26, %s27
    %p38 = scmp.eq.s32.totalorder %s18, 0
    %p39 = por %p37, %p38
    %p40 = scmp.ne.s32.totalorder %s26, %s27
    %p41 = scmp.eq.s32.totalorder %s19, 1
    %p42 = por %p40, %p41
    %p44 = scmp.ne.s32.totalorder %s27, %s43
    %p45 = scmp.eq.s32.totalorder %s19, 0
    %p46 = por %p44, %p45
    %s48 = sadd.s32 %s47, 1
    %p51 = scmp.eq.s32.totalorder %s13, 1
    %p52 = scmp.ne.s32.totalorder %s47, %s49
    %p53 = scmp.eq.s32.totalorder %s13, 0
    %p54 = por %p52, %p53
    %p55 = scmp.ne.s32.totalorder %s47, %s49
    %p56 = scmp.eq.s32.totalorder %s18, 1
    %p57 = por %p55, %p56
    %p58 = scmp.ne.s32.totalorder %s49, %s50
    %p59 = scmp.eq.s32.totalorder %s18, 0
    %p60 = por %p58, %p59
    %p61 = scmp.ne.s32.totalorder %s49, %s50
    %p62 = scmp.eq.s32.totalorder %s19, 1
    %p63 = por %p61, %p62
    %p65 = scmp.ne.s32.totalorder %s50, %s64
    %p66 = scmp.eq.s32.totalorder %s19, 0
    %p67 = por %p65, %p66
    %s69 = sadd.s32 %s68, 1
    %p72 = scmp.eq.s32.totalorder %s13, 1
    %p73 = scmp.ne.s32.totalorder %s68, %s70
    %p74 = scmp.eq.s32.totalorder %s13, 0
    %p75 = por %p73, %p74
    %p76 = scmp.ne.s32.totalorder %s68, %s70
    %p77 = scmp.eq.s32.totalorder %s18, 1
    %p78 = por %p76, %p77
    %p79 = scmp.ne.s32.totalorder %s70, %s71
    %p80 = scmp.eq.s32.totalorder %s18, 0
    %p81 = por %p79, %p80
    %p82 = scmp.ne.s32.totalorder %s70, %s71
    %p83 = scmp.eq.s32.totalorder %s19, 1
    %p84 = por %p82, %p83
    %p86 = scmp.ne.s32.totalorder %s71, %s85
    %p87 = scmp.eq.s32.totalorder %s19, 0
    %p88 = por %p86, %p87
    %s90 = sadd.s32 %s89, 1
    %p93 = scmp.eq.s32.totalorder %s13, 1
    %p94 = scmp.ne.s32.totalorder %s89, %s91
    %p95 = scmp.eq.s32.totalorder %s13, 0
    %p96 = por %p94, %p95
    %p97 = scmp.ne.s32.totalorder %s89, %s91
    %p98 = scmp.eq.s32.totalorder %s18, 1
    %p99 = por %p97, %p98
    %p100 = scmp.ne.s32.totalorder %s91, %s92
    %p101 = scmp.eq.s32.totalorder %s18, 0
    %p102 = por %p100, %p101
    %p103 = scmp.ne.s32.totalorder %s91, %s92
    %p104 = scmp.eq.s32.totalorder %s19, 1
    %p105 = por %p103, %p104
    %p107 = scmp.ne.s32.totalorder %s92, %s106
    %p108 = scmp.eq.s32.totalorder %s19, 0
    %p109 = por %p107, %p108
    %s111 = sadd.s32 %s110, 1
    %p114 = scmp.eq.s32.totalorder %s13, 1
    %p115 = scmp.ne.s32.totalorder %s110, %s112
    %p116 = scmp.eq.s32.totalorder %s13, 0
    %p117 = por %p115, %p116
    %p118 = scmp.ne.s32.totalorder %s110, %s112
    %p119 = scmp.eq.s32.totalorder %s18, 1
    %p120 = por %p118, %p119
    %p121 = scmp.ne.s32.totalorder %s112, %s113
    %p122 = scmp.eq.s32.totalorder %s18, 0
    %p123 = por %p121, %p122
    %p124 = scmp.ne.s32.totalorder %s112, %s113
    %p125 = scmp.eq.s32.totalorder %s19, 1
    %p126 = por %p124, %p125
    %p128 = scmp.ne.s32.totalorder %s113, %s127
    %p129 = scmp.eq.s32.totalorder %s19, 0
    %p130 = por %p128, %p129
    %s131 = ssub.s32 %s13, %s20
    %p132 = scmp.eq.s32.totalorder %s131, 0
    %s134 = sadd.s32 %s133, 1
    %s135 = scalar_select %p132, %s133, %s134
    %p138 = pneg %p132
    %p139 = scmp.eq.s32.totalorder %s13, 1
    %p140 = por %p138, %p139
    %p141 = scmp.ne.s32.totalorder %s133, %s136
    %p142 = scmp.eq.s32.totalorder %s13, 0
    %p143 = por %p141, %p142
    %p144 = scmp.ne.s32.totalorder %s133, %s136
    %p145 = scmp.eq.s32.totalorder %s18, 1
    %p146 = por %p144, %p145
    %p147 = scmp.ne.s32.totalorder %s136, %s137
    %p148 = scmp.eq.s32.totalorder %s18, 0
    %p149 = por %p147, %p148
    %p150 = scmp.ne.s32.totalorder %s136, %s137
    %p151 = scmp.eq.s32.totalorder %s19, 1
    %p152 = por %p150, %p151
    %p154 = scmp.ne.s32.totalorder %s137, %s153
    %p155 = scmp.eq.s32.totalorder %s19, 0
    %p156 = por %p154, %p155
    %s157 = ssub.s32 %s13, %s20
    %p158 = scmp.eq.s32.totalorder %s157, 0
    %s160 = sadd.s32 %s159, 1
    %s161 = scalar_select %p158, %s159, %s160
    %p164 = pneg %p158
    %p165 = scmp.eq.s32.totalorder %s13, 1
    %p166 = por %p164, %p165
    %p167 = scmp.ne.s32.totalorder %s159, %s162
    %p168 = scmp.eq.s32.totalorder %s13, 0
    %p169 = por %p167, %p168
    %p170 = scmp.ne.s32.totalorder %s159, %s162
    %p171 = scmp.eq.s32.totalorder %s18, 1
    %p172 = por %p170, %p171
    %p173 = scmp.ne.s32.totalorder %s162, %s163
    %p174 = scmp.eq.s32.totalorder %s18, 0
    %p175 = por %p173, %p174
    %p176 = scmp.ne.s32.totalorder %s162, %s163
    %p177 = scmp.eq.s32.totalorder %s19, 1
    %p178 = por %p176, %p177
    %p180 = scmp.ne.s32.totalorder %s163, %s179
    %p181 = scmp.eq.s32.totalorder %s19, 0
    %p182 = por %p180, %p181
    %p183 = scmp.le.s32.totalorder 1, %s13
    %p184 = scmp.lt.s32.totalorder %s13, 3
    %p185 = pnand %p183, %p184
    %p186 = pneg %p185
    // Predicated region
    $region9: #{basic_block.4} parent=5 // pred_check
      _
    $region10: #{basic_block.4} parent=5 // pred_check_branch
      %188 = sbr.rel (%p185) target = $region12
    $region11: #{basic_block.4} parent=5 // pred_region
      %s189 = ssub.s32 %s13, 1
      // Predicated region
      $region13: #{basic_block.4} parent=11 // pred_check
        %p190 = pneg %p60
      $region14: #{basic_block.4} parent=11 // pred_check_branch
        %192 = sbr.rel (%p190) target = $region16
      $region15: #{basic_block.4} parent=11 // pred_region
        _
      $region16: #{basic_block.4} parent=11 // pred_fallthru
        _
      // Predicated region
      $region17: #{basic_block.4} parent=11 // pred_check
        %p193 = pneg %p81
      $region18: #{basic_block.4} parent=11 // pred_check_branch
        %195 = sbr.rel (%p193) target = $region20
      $region19: #{basic_block.4} parent=11 // pred_region
        _
      $region20: #{basic_block.4} parent=11 // pred_fallthru
        _
      // Predicated region
      $region21: #{basic_block.4} parent=11 // pred_check
        %p196 = pneg %p102
      $region22: #{basic_block.4} parent=11 // pred_check_branch
        %198 = sbr.rel (%p196) target = $region24
      $region23: #{basic_block.4} parent=11 // pred_region
        _
      $region24: #{basic_block.4} parent=11 // pred_fallthru
        _
      // Predicated region
      $region25: #{basic_block.4} parent=11 // pred_check
        %p199 = pneg %p123
      $region26: #{basic_block.4} parent=11 // pred_check_branch
        %201 = sbr.rel (%p199) target = $region28
      $region27: #{basic_block.4} parent=11 // pred_region
        _
      $region28: #{basic_block.4} parent=11 // pred_fallthru
        _
    $region12: #{basic_block.4} parent=5 // pred_fallthru
      _
    %p202 = scmp.lt.s32.totalorder %s13, 2
    // Predicated region
    $region29: #{basic_block.4} parent=5 // pred_check
      %p203 = pneg %p202
    $region30: #{basic_block.4} parent=5 // pred_check_branch
      %205 = sbr.rel (%p203) target = $region32
    $region31: #{basic_block.4} parent=5 // pred_region
      // Predicated region
      $region33: #{basic_block.4} parent=31 // pred_check
        %p206 = pneg %p33
      $region34: #{basic_block.4} parent=31 // pred_check_branch
        %208 = sbr.rel (%p206) target = $region36
      $region35: #{basic_block.4} parent=31 // pred_region
        %p209 = scmp.lt.s32.totalorder %s13, 1
        %s210 = scalar_select %p209, %s13, 1
        %s211 = smul.addr %s210, 4
        %s212 = smul.addr %s211, 4
        %s213 = scalar_lea.vmem %s0, %s212
      $region36: #{basic_block.4} parent=31 // pred_fallthru
        _
    $region32: #{basic_block.4} parent=5 // pred_fallthru
      _
    %p214 = scmp.le.s32.totalorder 1, %s13
    %p215 = scmp.lt.s32.totalorder %s13, 3
    %p216 = pnand %p214, %p215
    %p217 = pneg %p216
    // Predicated region
    $region37: #{basic_block.4} parent=5 // pred_check
      _
    $region38: #{basic_block.4} parent=5 // pred_check_branch
      %219 = sbr.rel (%p216) target = $region40
    $region39: #{basic_block.4} parent=5 // pred_region
      %s220 = ssub.s32 %s13, 1
      %p221 = scmp.lt.s32.totalorder %s18, 1
      %s222 = scalar_select %p221, %s18, 1
      %s223 = smul.addr %s222, 4
      %s224 = smul.addr %s223, 4
      %s225 = scalar_lea.vmem %s0, %s224
      %p226 = pneg %p39
      %p227 = pneg %p36
      %p228 = pneg %p60
      %p229 = pneg %p57
      %p230 = pneg %p81
      %p231 = pneg %p78
      %p232 = pneg %p102
      %p233 = pneg %p99
      %p234 = pneg %p123
      %p235 = pneg %p120
      %p236 = pneg %p149
      %p237 = pneg %p146
      %p238 = scmp.lt.s32.totalorder %s18, 1
      %s239 = scalar_select %p238, %s18, 1
      %s240 = smul.addr %s239, 4
      %s241 = smul.addr %s240, 4
      %s242 = scalar_lea.vmem %s5, %s241
      %p243 = pneg %p175
      %p244 = pneg %p172
      %p245 = scmp.lt.s32.totalorder %s18, 1
      %s246 = scalar_select %p245, %s18, 1
      %s247 = smul.addr %s246, 2
      %s248 = smul.addr %s247, 8
      %s249 = scalar_lea.vmem %s6, %s248
      %p250 = scmp.lt.s32.totalorder %s18, 1
      %s251 = scalar_select %p250, %s18, 1
      %s252 = smul.addr %s251, 4
      %s253 = smul.addr %s252, 4
      %s254 = scalar_lea.vmem %s0, %s253
      %p255 = scmp.lt.s32.totalorder %s18, 1
      %s256 = scalar_select %p255, %s18, 1
      %s257 = smul.addr %s256, 4
      %s258 = smul.addr %s257, 4
      %s259 = scalar_lea.vmem %s5, %s258
      %p260 = scmp.lt.s32.totalorder %s18, 1
      %s261 = scalar_select %p260, %s18, 1
      %s262 = smul.addr %s261, 2
      %s263 = smul.addr %s262, 8
      %s264 = scalar_lea.vmem %s6, %s263
      %v266 = vld [vmem:[%s1] sm:$0xff]
      %v267 = vld [vmem:[%s1 + $0x8] sm:$0xff]
      %v268 = vld [vmem:[%s2] sm:$0xff]
      %v269 = vld [vmem:[%s2 + $0x8] sm:$0xff]
      %v270 = vld [vmem:[%s254] sm:$0xff]
      %v271 = vld [vmem:[%s254 + $0x8] sm:$0xff]
      %v272 = vunpack.c.l.bf16 %v270
      %v273 = vunpack.c.h.bf16 %v270
      %v274 = vunpack.c.l.bf16 %v271
      %v275 = vunpack.c.h.bf16 %v271
      %277 = vset.pattern.permute.xlu0 0
      %278 = vperm.xlu0 %277, %v266
      %v279 = vpop.permute.xlu0 %278
      %282 = vset.pattern.permute.xlu0 0
      %283 = vperm.xlu0 %282, %v267
      %v284 = vpop.permute.xlu0 %283
      %v286 = vmul.f32 %v272, %v279
      %v287 = vmul.f32 %v273, %v279
      %v288 = vmul.f32 %v274, %v284
      %v289 = vmul.f32 %v275, %v284
      %291 = vset.pattern.permute.xlu0 0
      %292 = vperm.xlu0 %291, %v268
      %v293 = vpop.permute.xlu0 %292
      %296 = vset.pattern.permute.xlu0 0
      %297 = vperm.xlu0 %296, %v269
      %v298 = vpop.permute.xlu0 %297
      %v300 = vadd.f32 %v286, %v293
      %v301 = vadd.f32 %v287, %v293
      %v302 = vadd.f32 %v288, %v298
      %v303 = vadd.f32 %v289, %v298
      %v304 = vmax.f32 %v300, 0.0
      %v305 = vmax.f32 %v301, 0.0
      %v306 = vmax.f32 %v302, 0.0
      %v307 = vmax.f32 %v303, 0.0
      %308 = vrot.lane.b32.xlu0 %v304, 17
      %v309 = vpop.permute.xlu0 %308
      %310 = vrot.lane.b32.xlu0 %v306, 17
      %v311 = vpop.permute.xlu0 %310
      %312 = vrot.lane.b32.xlu0 %v305, 17
      %v313 = vpop.permute.xlu0 %312
      %314 = vrot.lane.b32.xlu0 %v307, 17
      %v315 = vpop.permute.xlu0 %314
      %v316 = vlaneseq
      %v317 = vand.u32 %v316, 127
      %vm318 = vcmp.lt.s32.totalorder %v317, 17
      %v319 = vsel %vm318, %v309, %v313
      %v320 = vsel %vm318, %v311, %v315
      %v321 = vsel %vm318, %v313, %v309
      %v322 = vsel %vm318, %v315, %v311
      %v323 = vld [vmem:[%s4] ss:$8 sm:$0x3]
      %v325 = vperm.slane %v323, 0
      %v326 = vperm.slane %v323, 1
      %v329 = vmul.f32 %v321, %v325
      %v330 = vmul.f32 %v319, %v326
      %v331 = vmul.f32 %v322, %v325
      %v332 = vmul.f32 %v320, %v326
      %v333 = vpack.c.bf16 %v330, %v329
      %v334 = vpack.c.bf16 %v332, %v331
      %335 = vst [vmem:[#allocation2] sm:$0xff] %v333
      %336 = vst [vmem:[#allocation2 + $0x8] sm:$0xff] %v334
      %337 = vrot.lane.b32.xlu0 %v304, 16
      %v338 = vpop.permute.xlu0 %337
      %339 = vrot.lane.b32.xlu0 %v306, 16
      %v340 = vpop.permute.xlu0 %339
      %341 = vrot.lane.b32.xlu0 %v305, 16
      %v342 = vpop.permute.xlu0 %341
      %343 = vrot.lane.b32.xlu0 %v307, 16
      %v344 = vpop.permute.xlu0 %343
      %vm345 = vcmp.lt.s32.totalorder %v317, 16
      %v346 = vsel %vm345, %v338, %v342
      %v347 = vsel %vm345, %v340, %v344
      %v348 = vsel %vm345, %v342, %v338
      %v349 = vsel %vm345, %v344, %v340
      %s350 = scalar_lea.vmem %s4, 1
      %v351 = vld [vmem:[%s350] ss:$8 sm:$0x3]
      %v353 = vperm.slane %v351, 0
      %v354 = vperm.slane %v351, 1
      %v357 = vmul.f32 %v348, %v353
      %v358 = vmul.f32 %v346, %v354
      %v359 = vmul.f32 %v349, %v353
      %v360 = vmul.f32 %v347, %v354
      %v361 = vpack.c.bf16 %v358, %v357
      %v362 = vpack.c.bf16 %v360, %v359
      %363 = vst [vmem:[#allocation2 + $0x10] sm:$0xff] %v361
      %364 = vst [vmem:[#allocation2 + $0x18] sm:$0xff] %v362
      %365 = vrot.lane.b32.xlu0 %v304, 15
      %v366 = vpop.permute.xlu0 %365
      %367 = vrot.lane.b32.xlu0 %v306, 15
      %v368 = vpop.permute.xlu0 %367
      %369 = vrot.lane.b32.xlu0 %v305, 15
      %v370 = vpop.permute.xlu0 %369
      %371 = vrot.lane.b32.xlu0 %v307, 15
      %v372 = vpop.permute.xlu0 %371
      %vm373 = vcmp.lt.s32.totalorder %v317, 15
      %v374 = vsel %vm373, %v366, %v370
      %v375 = vsel %vm373, %v368, %v372
      %v376 = vsel %vm373, %v370, %v366
      %v377 = vsel %vm373, %v372, %v368
      %s378 = scalar_lea.vmem %s4, 2
      %v379 = vld [vmem:[%s378] ss:$8 sm:$0x3]
      %v381 = vperm.slane %v379, 0
      %v382 = vperm.slane %v379, 1
      %v385 = vmul.f32 %v376, %v381
      %v386 = vmul.f32 %v374, %v382
      %v387 = vmul.f32 %v377, %v381
      %v388 = vmul.f32 %v375, %v382
      %v389 = vpack.c.bf16 %v386, %v385
      %v390 = vpack.c.bf16 %v388, %v387
      %391 = vst [vmem:[#allocation2 + $0x20] sm:$0xff] %v389
      %392 = vst [vmem:[#allocation2 + $0x28] sm:$0xff] %v390
      %393 = vrot.lane.b32.xlu0 %v304, 1
      %v394 = vpop.permute.xlu0 %393
      %395 = vrot.lane.b32.xlu0 %v306, 1
      %v396 = vpop.permute.xlu0 %395
      %397 = vrot.lane.b32.xlu0 %v305, 1
      %v398 = vpop.permute.xlu0 %397
      %399 = vrot.lane.b32.xlu0 %v307, 1
      %v400 = vpop.permute.xlu0 %399
      %vm401 = vcmp.lt.s32.totalorder %v317, 1
      %v402 = vsel %vm401, %v394, %v398
      %v403 = vsel %vm401, %v396, %v400
      %v404 = vsel %vm401, %v398, %v394
      %v405 = vsel %vm401, %v400, %v396
      %s406 = scalar_lea.vmem %s4, 3
      %v407 = vld [vmem:[%s406] ss:$8 sm:$0x3]
      %v409 = vperm.slane %v407, 0
      %v410 = vperm.slane %v407, 1
      %v413 = vmul.f32 %v404, %v409
      %v414 = vmul.f32 %v402, %v410
      %v415 = vmul.f32 %v405, %v409
      %v416 = vmul.f32 %v403, %v410
      %v417 = vpack.c.bf16 %v414, %v413
      %v418 = vpack.c.bf16 %v416, %v415
      %419 = vst [vmem:[#allocation2 + $0x30] sm:$0xff] %v417
      %420 = vst [vmem:[#allocation2 + $0x38] sm:$0xff] %v418
      %v421 = vpack.c.bf16 %v305, %v304
      %v422 = vpack.c.bf16 %v307, %v306
      %423 = vst [vmem:[#allocation2 + $0x40] sm:$0xff] %v421
      %424 = vst [vmem:[#allocation2 + $0x48] sm:$0xff] %v422
      %425 = vrot.lane.b32.xlu0 %v304, 127
      %v426 = vpop.permute.xlu0 %425
      %427 = vrot.lane.b32.xlu0 %v306, 127
      %v428 = vpop.permute.xlu0 %427
      %429 = vrot.lane.b32.xlu0 %v305, 127
      %v430 = vpop.permute.xlu0 %429
      %431 = vrot.lane.b32.xlu0 %v307, 127
      %v432 = vpop.permute.xlu0 %431
      %vm433 = vcmp.lt.s32.totalorder %v317, 127
      %v434 = vsel %vm433, %v426, %v430
      %v435 = vsel %vm433, %v428, %v432
      %v436 = vsel %vm433, %v430, %v426
      %v437 = vsel %vm433, %v432, %v428
      %s438 = scalar_lea.vmem %s4, 5
      %v439 = vld [vmem:[%s438] ss:$8 sm:$0x3]
      %v441 = vperm.slane %v439, 0
      %v442 = vperm.slane %v439, 1
      %v445 = vmul.f32 %v434, %v441
      %v446 = vmul.f32 %v436, %v442
      %v447 = vmul.f32 %v435, %v441
      %v448 = vmul.f32 %v437, %v442
      %v449 = vpack.c.bf16 %v446, %v445
      %v450 = vpack.c.bf16 %v448, %v447
      %451 = vst [vmem:[#allocation2 + $0x50] sm:$0xff] %v449
      %452 = vst [vmem:[#allocation2 + $0x58] sm:$0xff] %v450
      %453 = vrot.lane.b32.xlu0 %v304, 113
      %v454 = vpop.permute.xlu0 %453
      %455 = vrot.lane.b32.xlu0 %v306, 113
      %v456 = vpop.permute.xlu0 %455
      %457 = vrot.lane.b32.xlu0 %v305, 113
      %v458 = vpop.permute.xlu0 %457
      %459 = vrot.lane.b32.xlu0 %v307, 113
      %v460 = vpop.permute.xlu0 %459
      %vm461 = vcmp.lt.s32.totalorder %v317, 113
      %v462 = vsel %vm461, %v454, %v458
      %v463 = vsel %vm461, %v456, %v460
      %v464 = vsel %vm461, %v458, %v454
      %v465 = vsel %vm461, %v460, %v456
      %s466 = scalar_lea.vmem %s4, 6
      %v467 = vld [vmem:[%s466] ss:$8 sm:$0x3]
      %v469 = vperm.slane %v467, 0
      %v470 = vperm.slane %v467, 1
      %v473 = vmul.f32 %v462, %v469
      %v474 = vmul.f32 %v464, %v470
      %v475 = vmul.f32 %v463, %v469
      %v476 = vmul.f32 %v465, %v470
      %v477 = vpack.c.bf16 %v474, %v473
      %v478 = vpack.c.bf16 %v476, %v475
      %479 = vst [vmem:[#allocation2 + $0x60] sm:$0xff] %v477
      %480 = vst [vmem:[#allocation2 + $0x68] sm:$0xff] %v478
      %481 = vrot.lane.b32.xlu0 %v304, 112
      %v482 = vpop.permute.xlu0 %481
      %483 = vrot.lane.b32.xlu0 %v306, 112
      %v484 = vpop.permute.xlu0 %483
      %485 = vrot.lane.b32.xlu0 %v305, 112
      %v486 = vpop.permute.xlu0 %485
      %487 = vrot.lane.b32.xlu0 %v307, 112
      %v488 = vpop.permute.xlu0 %487
      %vm489 = vcmp.lt.s32.totalorder %v317, 112
      %v490 = vsel %vm489, %v482, %v486
      %v491 = vsel %vm489, %v484, %v488
      %v492 = vsel %vm489, %v486, %v482
      %v493 = vsel %vm489, %v488, %v484
      %s494 = scalar_lea.vmem %s4, 7
      %v495 = vld [vmem:[%s494] ss:$8 sm:$0x3]
      %v497 = vperm.slane %v495, 0
      %v498 = vperm.slane %v495, 1
      %v501 = vmul.f32 %v490, %v497
      %v502 = vmul.f32 %v492, %v498
      %v503 = vmul.f32 %v491, %v497
      %v504 = vmul.f32 %v493, %v498
      %v505 = vpack.c.bf16 %v502, %v501
      %v506 = vpack.c.bf16 %v504, %v503
      %507 = vst [vmem:[#allocation2 + $0x70] sm:$0xff] %v505
      %508 = vst [vmem:[#allocation2 + $0x78] sm:$0xff] %v506
      %509 = vrot.lane.b32.xlu0 %v304, 111
      %v510 = vpop.permute.xlu0 %509
      %511 = vrot.lane.b32.xlu0 %v306, 111
      %v512 = vpop.permute.xlu0 %511
      %513 = vrot.lane.b32.xlu0 %v305, 111
      %v514 = vpop.permute.xlu0 %513
      %515 = vrot.lane.b32.xlu0 %v307, 111
      %v516 = vpop.permute.xlu0 %515
      %vm517 = vcmp.lt.s32.totalorder %v317, 111
      %v518 = vsel %vm517, %v510, %v514
      %v519 = vsel %vm517, %v512, %v516
      %v520 = vsel %vm517, %v514, %v510
      %v521 = vsel %vm517, %v516, %v512
      %s522 = scalar_lea.vmem %s4, 16
      %v523 = vld [vmem:[%s522] ss:$8 sm:$0x3]
      %v525 = vperm.slane %v523, 0
      %v526 = vperm.slane %v523, 1
      %v529 = vmul.f32 %v518, %v525
      %v530 = vmul.f32 %v520, %v526
      %v531 = vmul.f32 %v519, %v525
      %v532 = vmul.f32 %v521, %v526
      %v533 = vpack.c.bf16 %v530, %v529
      %v534 = vpack.c.bf16 %v532, %v531
      %535 = vst [vmem:[#allocation2 + $0x80] sm:$0xff] %v533
      %536 = vst [vmem:[#allocation2 + $0x88] sm:$0xff] %v534
      %v537 = vld [vmem:[%s3] sm:$0xff]
      %v538 = vld [vmem:[%s3 + $0x8] sm:$0xff]
      %v539 = vld [vmem:[#allocation2] sm:$0xff]
      %v540 = vld [vmem:[#allocation2 + $0x8] sm:$0xff]
      %v541 = vld [vmem:[#allocation2 + $0x10] sm:$0xff]
      %v542 = vld [vmem:[#allocation2 + $0x18] sm:$0xff]
      %v543 = vld [vmem:[#allocation2 + $0x20] sm:$0xff]
      %v544 = vld [vmem:[#allocation2 + $0x28] sm:$0xff]
      %v545 = vld [vmem:[#allocation2 + $0x30] sm:$0xff]
      %v546 = vld [vmem:[#allocation2 + $0x38] sm:$0xff]
      %v547 = vld [vmem:[#allocation2 + $0x40] sm:$0xff]
      %v548 = vld [vmem:[#allocation2 + $0x48] sm:$0xff]
      %v549 = vld [vmem:[#allocation2 + $0x50] sm:$0xff]
      %v550 = vld [vmem:[#allocation2 + $0x58] sm:$0xff]
      %v551 = vld [vmem:[#allocation2 + $0x60] sm:$0xff]
      %v552 = vld [vmem:[#allocation2 + $0x68] sm:$0xff]
      %v553 = vld [vmem:[#allocation2 + $0x70] sm:$0xff]
      %v554 = vld [vmem:[#allocation2 + $0x78] sm:$0xff]
      %v555 = vld [vmem:[#allocation2 + $0x80] sm:$0xff]
      %v556 = vld [vmem:[#allocation2 + $0x88] sm:$0xff]
      %v559 = vunpack.c.l.b16 %v537
      %v560 = vunpack.c.h.b16 %v537
      %v561 = vunpack.c.l.b16 %v538
      %v562 = vunpack.c.h.b16 %v538
      %v563 = vpack.c.b16 %v561, %v559
      %v564 = vpack.c.b16 %v562, %v560
      %v584 = vunpack.c.l.b16 %v539
      %v585 = vunpack.c.h.b16 %v539
      %v586 = vunpack.c.l.b16 %v540
      %v587 = vunpack.c.h.b16 %v540
      %v588 = vunpack.c.l.b16 %v541
      %v589 = vunpack.c.h.b16 %v541
      %v590 = vunpack.c.l.b16 %v542
      %v591 = vunpack.c.h.b16 %v542
      %v592 = vunpack.c.l.b16 %v543
      %v593 = vunpack.c.h.b16 %v543
      %v594 = vunpack.c.l.b16 %v544
      %v595 = vunpack.c.h.b16 %v544
      %v596 = vunpack.c.l.b16 %v545
      %v597 = vunpack.c.h.b16 %v545
      %v598 = vunpack.c.l.b16 %v546
      %v599 = vunpack.c.h.b16 %v546
      %v600 = vunpack.c.l.b16 %v547
      %v601 = vunpack.c.h.b16 %v547
      %v602 = vunpack.c.l.b16 %v548
      %v603 = vunpack.c.h.b16 %v548
      %v604 = vunpack.c.l.b16 %v549
      %v605 = vunpack.c.h.b16 %v549
      %v606 = vunpack.c.l.b16 %v550
      %v607 = vunpack.c.h.b16 %v550
      %v608 = vunpack.c.l.b16 %v551
      %v609 = vunpack.c.h.b16 %v551
      %v610 = vunpack.c.l.b16 %v552
      %v611 = vunpack.c.h.b16 %v552
      %v612 = vunpack.c.l.b16 %v553
      %v613 = vunpack.c.h.b16 %v553
      %v614 = vunpack.c.l.b16 %v554
      %v615 = vunpack.c.h.b16 %v554
      %v616 = vunpack.c.l.b16 %v555
      %v617 = vunpack.c.h.b16 %v555
      %v618 = vunpack.c.l.b16 %v556
      %v619 = vunpack.c.h.b16 %v556
      %v620 = vpack.c.b16 %v586, %v584
      %v621 = vpack.c.b16 %v587, %v585
      %v622 = vpack.c.b16 %v590, %v588
      %v623 = vpack.c.b16 %v591, %v589
      %v624 = vpack.c.b16 %v594, %v592
      %v625 = vpack.c.b16 %v595, %v593
      %v626 = vpack.c.b16 %v598, %v596
      %v627 = vpack.c.b16 %v599, %v597
      %v628 = vpack.c.b16 %v602, %v600
      %v629 = vpack.c.b16 %v603, %v601
      %v630 = vpack.c.b16 %v606, %v604
      %v631 = vpack.c.b16 %v607, %v605
      %v632 = vpack.c.b16 %v610, %v608
      %v633 = vpack.c.b16 %v611, %v609
      %v634 = vpack.c.b16 %v614, %v612
      %v635 = vpack.c.b16 %v615, %v613
      %v636 = vpack.c.b16 %v618, %v616
      %v637 = vpack.c.b16 %v619, %v617
      %vm656 = vcmask 130048
      %v658 = vsel %vm656, %v564, 0
      %660 = vmatpush.bf16.msra.mxu0 %v634
      %661 = vmatpush.bf16.msra.mxu0 %v632
      %662 = vmatpush.bf16.msra.mxu0 %v630
      %663 = vmatpush.bf16.msra.mxu0 %v628
      %664 = vmatpush.bf16.msra.mxu0 %v626
      %665 = vmatpush.bf16.msra.mxu0 %v624
      %666 = vmatpush.bf16.msra.mxu0 %v622
      %667 = vmatpush.bf16.msra.mxu0 %v620
      %668 = vmatmul.bf16.gmra.mxu0 %v563
      %v669 = vpop.f32.mrf.mxu0
      %v670 = vadd.f32 0.0, %v669
      %v671 = vpop.f32.mrf.mxu0
      %v672 = vadd.f32 0.0, %v671
      %673 = vdwg.mxu0
      %674 = vmatpush.bf16.msra.mxu0 0
      %675 = vmatpush.bf16.msra.mxu0 0
      %676 = vmatpush.bf16.msra.mxu0 0
      %677 = vmatpush.bf16.msra.mxu0 0
      %678 = vmatpush.bf16.msra.mxu0 0
      %679 = vmatpush.bf16.msra.mxu0 0
      %680 = vmatpush.bf16.msra.mxu0 0
      %681 = vmatpush.bf16.msra.mxu0 %v636
      %682 = vmatmul.bf16.gmra.mxu0 %v658
      %v683 = vpop.f32.mrf.mxu0
      %v684 = vadd.f32 %v670, %v683
      %v685 = vpop.f32.mrf.mxu0
      %v686 = vadd.f32 %v672, %v685
      %687 = vdwg.mxu0
      %688 = vmatpush.bf16.msra.mxu0 %v635
      %689 = vmatpush.bf16.msra.mxu0 %v633
      %690 = vmatpush.bf16.msra.mxu0 %v631
      %691 = vmatpush.bf16.msra.mxu0 %v629
      %692 = vmatpush.bf16.msra.mxu0 %v627
      %693 = vmatpush.bf16.msra.mxu0 %v625
      %694 = vmatpush.bf16.msra.mxu0 %v623
      %695 = vmatpush.bf16.msra.mxu0 %v621
      %696 = vmatmul.bf16.gmra.mxu0 %v563
      %v697 = vpop.f32.mrf.mxu0
      %v698 = vadd.f32 0.0, %v697
      %v699 = vpop.f32.mrf.mxu0
      %v700 = vadd.f32 0.0, %v699
      %701 = vdwg.mxu0
      %702 = vmatpush.bf16.msra.mxu0 0
      %703 = vmatpush.bf16.msra.mxu0 0
      %704 = vmatpush.bf16.msra.mxu0 0
      %705 = vmatpush.bf16.msra.mxu0 0
      %706 = vmatpush.bf16.msra.mxu0 0
      %707 = vmatpush.bf16.msra.mxu0 0
      %708 = vmatpush.bf16.msra.mxu0 0
      %709 = vmatpush.bf16.msra.mxu0 %v637
      %710 = vmatmul.bf16.gmra.mxu0 %v658
      %v711 = vpop.f32.mrf.mxu0
      %v712 = vadd.f32 %v698, %v711
      %v713 = vpop.f32.mrf.mxu0
      %v714 = vadd.f32 %v700, %v713
      %715 = vdwg.mxu0
      %v716 = vpack.c.bf16 %v712, %v684
      %v717 = vpack.c.bf16 %v714, %v686
      %718 = vst [vmem:[%s259] sm:$0xff] %v716
      %719 = vst [vmem:[%s259 + $0x8] sm:$0xff] %v717
      %v720 = vadd.f32 %v684, %v712
      %721 = vadd.xlane.f32.xlu0 %v720
      %v722 = vpop.xlane.xlu0 %721
      %v723 = vadd.f32 %v686, %v714
      %724 = vadd.xlane.f32.xlu0 %v723
      %v725 = vpop.xlane.xlu0 %724
      %v726 = vmul.f32 %v684, %v684
      %v727 = vmul.f32 %v712, %v712
      %v728 = vmul.f32 %v686, %v686
      %v729 = vmul.f32 %v714, %v714
      %v730 = vadd.f32 %v726, %v727
      %731 = vadd.xlane.f32.xlu0 %v730
      %v732 = vpop.xlane.xlu0 %731
      %v733 = vadd.f32 %v728, %v729
      %734 = vadd.xlane.f32.xlu0 %v733
      %v735 = vpop.xlane.xlu0 %734
      %vm736 = vcmask 7168
      %v737 = vsel %vm736, %v722, %v732
      %v738 = vsel %vm736, %v725, %v735
      %vm739 = vcmask 15360
      %740 = vst.msk [vmem:[%s264] sm:$0xff] %vm739, %v737
      %741 = vst.msk [vmem:[%s264 + $0x8] sm:$0xff] %vm739, %v738
      %p742 = scmp.lt.s32.totalorder %s18, 1
      %s743 = scalar_select %p742, %s18, 1
      %s744 = smul.addr %s743, 4
      %s745 = smul.addr %s744, 4
      %s746 = scalar_lea.vmem %s5, %s745
      %p747 = scmp.lt.s32.totalorder %s18, 1
      %s748 = scalar_select %p747, %s18, 1
      %s749 = smul.addr %s748, 2
      %s750 = smul.addr %s749, 8
      %s751 = scalar_lea.vmem %s6, %s750
      // Predicated region
      $region41: #{basic_block.4} parent=39 // pred_check
        %p752 = pneg %p146
      $region42: #{basic_block.4} parent=39 // pred_check_branch
        %754 = sbr.rel (%p752) target = $region44
      $region43: #{basic_block.4} parent=39 // pred_region
        _
      $region44: #{basic_block.4} parent=39 // pred_fallthru
        _
      // Predicated region
      $region45: #{basic_block.4} parent=39 // pred_check
        %p755 = pneg %p172
      $region46: #{basic_block.4} parent=39 // pred_check_branch
        %757 = sbr.rel (%p755) target = $region48
      $region47: #{basic_block.4} parent=39 // pred_region
        _
      $region48: #{basic_block.4} parent=39 // pred_fallthru
        _
    $region40: #{basic_block.4} parent=5 // pred_fallthru
      _
    %p758 = scmp.le.s32.totalorder 2, %s13
    // Predicated region
    $region49: #{basic_block.4} parent=5 // pred_check
      %p759 = pneg %p758
    $region50: #{basic_block.4} parent=5 // pred_check_branch
      %761 = sbr.rel (%p759) target = $region52
    $region51: #{basic_block.4} parent=5 // pred_region
      %s762 = ssub.s32 %s13, 2
      // Predicated region
      $region53: #{basic_block.4} parent=51 // pred_check
        %p763 = pneg %p152
      $region54: #{basic_block.4} parent=51 // pred_check_branch
        %765 = sbr.rel (%p763) target = $region56
      $region55: #{basic_block.4} parent=51 // pred_region
        %p766 = scmp.lt.s32.totalorder %s19, 1
        %s767 = scalar_select %p766, %s19, 1
        %s768 = smul.addr %s767, 4
        %s769 = smul.addr %s768, 4
        %s770 = scalar_lea.vmem %s5, %s769
      $region56: #{basic_block.4} parent=51 // pred_fallthru
        _
      // Predicated region
      $region57: #{basic_block.4} parent=51 // pred_check
        %p771 = pneg %p178
      $region58: #{basic_block.4} parent=51 // pred_check_branch
        %773 = sbr.rel (%p771) target = $region60
      $region59: #{basic_block.4} parent=51 // pred_region
        %p774 = scmp.lt.s32.totalorder %s19, 1
        %s775 = scalar_select %p774, %s19, 1
        %s776 = smul.addr %s775, 2
        %s777 = smul.addr %s776, 8
        %s778 = scalar_lea.vmem %s6, %s777
      $region60: #{basic_block.4} parent=51 // pred_fallthru
        _
    $region52: #{basic_block.4} parent=5 // pred_fallthru
      _
  $region6: #{basic_block.4} parent=0 // loop_footer
    %s17 = sadd.s32 1, %s13
  $region7: #{basic_block.4} parent=0 // loop_footer_branch
    %12 = sbr.rel target = $region3
  $region8: #{basic_block.4} parent=0 // loop_exit
    _

</llo_original>
